<compile_context>
chip_gen: v6e
topology: v6e:2x2x1
jax: 0.10.0
libtpu: 0.0.40
codegen_flags: <defaults>
</compile_context>

<pallas_src>
import functools
import math

import jax
import jax.numpy as jnp
import numpy as np
from jax.experimental import pallas as pl
from jax.experimental.pallas import tpu as pltpu

# ---- configuration (mirrors args) -------------------------------------------------
N_AGENTS = 8          # args.nagents
HID = 32              # args.hid_size
GCN_OUT = 16          # gcn_encoder output dim feeding self.encoder = Linear(16, hid)
COMM_PASSES = 2       # args.comm_passes
N_ACTIONS = 5         # args.naction_heads = [5]
NODE_DIM = (N_AGENTS + 1) * 4                 # mapdecode output (36)
EDGE_DIM = (N_AGENTS + 1) * (N_AGENTS + 1)    # gnn_decoder output (81)

LG = 128                                       # lane group (vreg lane width)
QDIM = 16                                      # state2query out
KDIM = 16                                      # state2key out
QKV_DIM = QDIM + KDIM + HID                    # fused q|k|v projection (64)
HEAD_DIM = 1 + N_AGENTS + N_ACTIONS            # fused vh|vg|action heads (14)

# packed input-state slab: 4 lane groups, each piece at a 128-aligned offset
S_X, S_H, S_C, S_M = 0 * LG, 1 * LG, 2 * LG, 3 * LG
STATE_W = 4 * LG

# packed output slab: 4 lane groups
O_HC, O_NODE, O_EDGE, O_HEADS = 0 * LG, 1 * LG, 2 * LG, 3 * LG
OUT_W = 4 * LG


def _leaky_relu(x, slope=0.01):
    return jnp.where(x > 0, x, slope * x)


# ---- host-side parameter packing ---------------------------------------------------
def pack_params(params):
    """Pack all weights/biases into one (R, 128) f32 slab.

    Weights are stored as (in_rows, out_cols) blocks zero-padded to 128 lanes.
    Biases are pre-broadcast to 8 (= N_AGENTS) identical rows, padded to 128 lanes.
    All block row offsets are multiples of 8 (sublane aligned).
    Returns (packed_jnp_array, {name: row_offset}).
    """
    (enc_w1, enc_b1, enc_w2, enc_b2, q_w, q_b, k_w, k_b, v_w, v_b,
     c_ws, c_bs, wih, whh, blstm,
     map_w1, map_b1, map_w2, map_b2, gnn_w1, gnn_b1, gnn_w2, gnn_b2,
     vh_w, vh_b, vg_w, vg_b, head_w, head_b) = [np.asarray(p, np.float32) for p in params]

    blocks, offsets, row = [], {}, [0]

    def add_w(name, w):
        r, c = w.shape
        r8 = ((r + 7) // 8) * 8
        blk = np.zeros((r8, LG), np.float32)
        blk[:r, :c] = w
        offsets[name] = row[0]
        blocks.append(blk)
        row[0] += r8

    def add_b(name, b):
        b = np.asarray(b, np.float32).reshape(-1)
        blk = np.zeros((N_AGENTS, LG), np.float32)
        blk[:, :b.shape[0]] = b[None, :]
        offsets[name] = row[0]
        blocks.append(blk)
        row[0] += N_AGENTS

    # fused weights
    qkv_w = np.concatenate([q_w, k_w, v_w], axis=1)                     # (32, 64)
    qkv_b = np.concatenate([q_b.reshape(-1), k_b.reshape(-1), v_b.reshape(-1)])
    lstm_x_w = wih[:HID, :]                                             # (32, 128)
    lstm_ch_w = np.concatenate([wih[HID:2 * HID, :], whh], axis=0)      # (64, 128)
    dec1_w = np.concatenate([map_w1, gnn_w1], axis=1)                   # (32, 64)
    dec1_b = np.concatenate([map_b1.reshape(-1), gnn_b1.reshape(-1)])
    heads_w = np.concatenate([vh_w, vg_w, head_w], axis=1)              # (32, 14)
    heads_b = np.concatenate([vh_b.reshape(-1), vg_b.reshape(-1), head_b.reshape(-1)])

    add_w("enc_w1", enc_w1); add_b("enc_b1", enc_b1)
    add_w("enc_w2", enc_w2); add_b("enc_b2", enc_b2)
    add_w("qkv_w", qkv_w);   add_b("qkv_b", qkv_b)
    for p in range(COMM_PASSES):
        add_w(f"c_w{p}", c_ws[p]); add_b(f"c_b{p}", c_bs[p])
    add_w("lstm_x_w", lstm_x_w)
    add_w("lstm_ch_w", lstm_ch_w)
    add_b("lstm_b", blstm)
    add_w("dec1_w", dec1_w); add_b("dec1_b", dec1_b)
    add_w("map_w2", map_w2); add_b("map_b2", map_b2)
    add_w("gnn_w2", gnn_w2); add_b("gnn_b2", gnn_b2)
    add_w("heads_w", heads_w); add_b("heads_b", heads_b)

    return jnp.asarray(np.concatenate(blocks, axis=0)), offsets


# ---- Pallas kernel -----------------------------------------------------------------
def commnet_kernel(state_ref, params_ref, out_ref, *, off):
    f32 = jnp.float32
    dot = functools.partial(jnp.dot, preferred_element_type=f32)

    def W(name, rows, cols):           # static slice of packed param slab (weight)
        o = off[name]
        return params_ref[o:o + rows, 0:cols]

    def B(name, cols):                 # static slice (bias pre-broadcast to 8 rows)
        o = off[name]
        return params_ref[o:o + N_AGENTS, 0:cols]

    # --- unpack input-state slab (each piece 128-lane aligned) ---
    x_in = state_ref[:, S_X:S_X + GCN_OUT]          # (N, 16)
    h = state_ref[:, S_H:S_H + HID]                 # (N, H)
    c = state_ref[:, S_C:S_C + HID]                 # (N, H)
    mask = state_ref[:, S_M:S_M + 1]                # (N, 1) comm_action

    # --- state encoder: Linear(16,H) -> ReLU -> Linear(H,H) ---
    e = jnp.maximum(dot(x_in, W("enc_w1", GCN_OUT, HID)) + B("enc_b1", HID), 0.0)
    x_enc = dot(e, W("enc_w2", HID, HID)) + B("enc_b2", HID)

    # --- loop-invariant loads / precompute (hoisted out of the 2x unrolled loop) ---
    qkv_w = W("qkv_w", HID, QKV_DIM)                # (H, 64)
    qkv_b = B("qkv_b", QKV_DIM)                     # (N, 64)
    lstm_ch_w = W("lstm_ch_w", 2 * HID, 4 * HID)    # (2H, 4H)
    # x_enc contribution to the LSTM gates + combined bias (constant across passes)
    gx = dot(x_enc, W("lstm_x_w", HID, 4 * HID)) + B("lstm_b", 4 * HID)   # (N, 4H)

    scale = 1.0 / math.sqrt(HID)

    for p in range(COMM_PASSES):                    # comm passes (static unroll)
        # fused q|k|v projection; per-row mask commutes: (mask*h) @ Wk == mask*(h @ Wk)
        qkv = dot(h, qkv_w)                         # (N, 64)
        mqkv = mask * qkv                           # masked_msg projections
        q = qkv[:, 0:QDIM] + qkv_b[:, 0:QDIM]
        k = mqkv[:, QDIM:QDIM + KDIM] + qkv_b[:, QDIM:QDIM + KDIM]
        v = mqkv[:, QDIM + KDIM:QKV_DIM] + qkv_b[:, QDIM + KDIM:QKV_DIM]

        # scores = q @ k^T / sqrt(H); softmax over last axis
        scores = jax.lax.dot_general(
            q, k, (((1,), (1,)), ((), ())), preferred_element_type=f32) * scale
        scores = scores - jnp.max(scores, axis=-1, keepdims=True)
        es = jnp.exp(scores)
        attn = es * pl.reciprocal(jnp.sum(es, axis=-1, keepdims=True), approx=True)

        ctx = dot(attn, v)                                              # (N, H)
        cvec = dot(ctx, W(f"c_w{p}", HID, HID)) + B(f"c_b{p}", HID)     # C_modules[p]

        # LSTMCell(cat(x_enc, cvec), (h, c)); gate order i, f, g, o (PyTorch)
        gates = gx + dot(jnp.concatenate([cvec, h], axis=-1), lstm_ch_w)
        i_g = jax.nn.sigmoid(gates[:, 0:HID])
        f_g = jax.nn.sigmoid(gates[:, HID:2 * HID])
        g_g = jnp.tanh(gates[:, 2 * HID:3 * HID])
        o_g = jax.nn.sigmoid(gates[:, 3 * HID:4 * HID])
        c = f_g * c + i_g * g_g
        h = o_g * jnp.tanh(c)

    # --- decoders hoisted out of the loop (only the final pass is returned) ---
    dec1 = dot(h, W("dec1_w", HID, 2 * HID)) + B("dec1_b", 2 * HID)     # map|gnn layer 1
    node = _leaky_relu(
        dot(dec1[:, 0:HID], W("map_w2", HID, NODE_DIM)) + B("map_b2", NODE_DIM))
    edge = _leaky_relu(
        dot(dec1[:, HID:2 * HID], W("gnn_w2", HID, EDGE_DIM)) + B("gnn_b2", EDGE_DIM))

    # --- fused value_head | value_global | action head ---
    heads = dot(h, W("heads_w", HID, HEAD_DIM)) + B("heads_b", HEAD_DIM)  # (N, 14)
    logits = heads[:, 1 + N_AGENTS:HEAD_DIM]                              # action logits
    m = jnp.max(logits, axis=-1, keepdims=True)
    lse = jnp.log(jnp.sum(jnp.exp(logits - m), axis=-1, keepdims=True)) + m
    act = logits - lse                                                    # log_softmax

    # --- single lane-dense output slab (one write-back DMA) ---
    out_ref[...] = jnp.zeros((N_AGENTS, OUT_W), f32)
    out_ref[:, O_HC:O_HC + 2 * HID] = jnp.concatenate([h, c], axis=-1)
    out_ref[:, O_NODE:O_NODE + NODE_DIM] = node
    out_ref[:, O_EDGE:O_EDGE + EDGE_DIM] = edge
    out_ref[:, O_HEADS:O_HEADS + HEAD_DIM] = jnp.concatenate(
        [heads[:, 0:1 + N_AGENTS], act], axis=-1)


# ---- glue --------------------------------------------------------------------------
def _pad_lanes(a, width=LG):
    return jnp.pad(a, ((0, 0), (0, width - a.shape[1])))


def commnet_forward(x, h0, c0, comm_action, packed_params, offsets):
    mask = comm_action.reshape(N_AGENTS, 1).astype(jnp.float32)
    # single packed state slab (x | h | c | mask), each at a 128-lane-aligned offset
    state = jnp.concatenate(
        [_pad_lanes(x), _pad_lanes(h0), _pad_lanes(c0), _pad_lanes(mask)], axis=-1)

    vmem = pl.BlockSpec(memory_space=pltpu.MemorySpace.VMEM)
    out = pl.pallas_call(
        functools.partial(commnet_kernel, off=offsets),
        out_shape=jax.ShapeDtypeStruct((N_AGENTS, OUT_W), jnp.float32),
        in_specs=[vmem, vmem],
        out_specs=vmem,
    )(state, packed_params)

    h = out[:, O_HC:O_HC + HID]
    c = out[:, O_HC + HID:O_HC + 2 * HID]
    node = out[:, O_NODE:O_NODE + NODE_DIM]
    edge = out[:, O_EDGE:O_EDGE + EDGE_DIM]
    vh = out[:, O_HEADS:O_HEADS + 1]
    vg = out[:, O_HEADS + 1:O_HEADS + 1 + N_AGENTS]
    act = out[:, O_HEADS + 1 + N_AGENTS:O_HEADS + HEAD_DIM]

    action = [act.reshape(1, N_AGENTS, N_ACTIONS)]   # heads applied to h.view(1, N, H)
    return action, vh, vg, (h, c), node, edge


# ---- deterministic parameter init (synthetic; PyTorch Linear weights pre-transposed)
def init_params(key):
    std = 0.2
    ks = list(jax.random.split(key, 32))
    it = iter(ks)

    def w(shape):
        return std * jax.random.normal(next(it), shape, dtype=jnp.float32)

    return [
        w((GCN_OUT, HID)), w((1, HID)),                     # encoder Linear(16,H)
        w((HID, HID)), w((1, HID)),                         # encoder Linear(H,H)
        w((HID, 16)), w((1, 16)),                           # state2query
        w((HID, 16)), w((1, 16)),                           # state2key
        w((HID, HID)), w((1, HID)),                         # state2value
        w((COMM_PASSES, HID, HID)), w((COMM_PASSES, 1, HID)),  # C_modules (per pass)
        w((2 * HID, 4 * HID)), w((HID, 4 * HID)), w((1, 4 * HID)),  # LSTM W_ih^T, W_hh^T, b
        w((HID, HID)), w((1, HID)), w((HID, NODE_DIM)), w((1, NODE_DIM)),  # mapdecode
        w((HID, HID)), w((1, HID)), w((HID, EDGE_DIM)), w((1, EDGE_DIM)),  # gnn_decoder
        w((HID, 1)), w((1, 1)),                             # value_head
        w((HID, N_AGENTS)), w((1, N_AGENTS)),               # value_global
        w((HID, N_ACTIONS)), w((1, N_ACTIONS)),             # action head
    ]


# ---- pure-JAX reference (for a sanity check) ---------------------------------------
def reference_forward(x, h0, c0, comm_action, params):
    (enc_w1, enc_b1, enc_w2, enc_b2, q_w, q_b, k_w, k_b, v_w, v_b,
     c_ws, c_bs, wih, whh, blstm,
     map_w1, map_b1, map_w2, map_b2, gnn_w1, gnn_b1, gnn_w2, gnn_b2,
     vh_w, vh_b, vg_w, vg_b, head_w, head_b) = params
    mask = comm_action.reshape(N_AGENTS, 1).astype(jnp.float32)

    x_enc = jnp.maximum(x @ enc_w1 + enc_b1, 0.0) @ enc_w2 + enc_b2
    h, c = h0, c0
    node = edge = None
    for p in range(COMM_PASSES):
        masked = h * mask
        q = h @ q_w + q_b
        k = masked @ k_w + k_b
        v = masked @ v_w + v_b
        attn = jax.nn.softmax((q @ k.T) / math.sqrt(HID), axis=-1)
        cvec = (attn @ v) @ c_ws[p] + c_bs[p]
        gates = jnp.concatenate([x_enc, cvec], -1) @ wih + h @ whh + blstm
        i_g = jax.nn.sigmoid(gates[:, 0:HID])
        f_g = jax.nn.sigmoid(gates[:, HID:2 * HID])
        g_g = jnp.tanh(gates[:, 2 * HID:3 * HID])
        o_g = jax.nn.sigmoid(gates[:, 3 * HID:4 * HID])
        c = f_g * c + i_g * g_g
        h = o_g * jnp.tanh(c)
        node = _leaky_relu((h @ map_w1 + map_b1) @ map_w2 + map_b2)
        edge = _leaky_relu((h @ gnn_w1 + gnn_b1) @ gnn_w2 + gnn_b2)
    vh = h @ vh_w + vh_b
    vg = h @ vg_w + vg_b
    act = jax.nn.log_softmax(h @ head_w + head_b, axis=-1).reshape(1, N_AGENTS, N_ACTIONS)
    return [act], vh, vg, (h, c), node, edge


if __name__ == "__main__":
    key = jax.random.PRNGKey(0)
    k_x, k_h, k_p = jax.random.split(key, 3)

    # per-agent GCN/GAT node features (output of gcn_encoder, one row per agent)
    x = jax.random.normal(k_x, (N_AGENTS, GCN_OUT), dtype=jnp.float32)
    h0 = 0.1 * jax.random.normal(k_h, (N_AGENTS, HID), dtype=jnp.float32)
    c0 = jnp.zeros((N_AGENTS, HID), dtype=jnp.float32)
    comm_action = jnp.array([1, 0, 1, 1, 0, 1, 1, 0], dtype=jnp.float32)
    params = init_params(k_p)

    packed, offsets = pack_params(params)          # one-time host-side packing
    fwd = jax.jit(functools.partial(commnet_forward, offsets=offsets))

    out = fwd(x, h0, c0, comm_action, packed)
    out = jax.block_until_ready(out)

    ref = reference_forward(x, h0, c0, comm_action, params)
    for a, b in zip(jax.tree_util.tree_leaves(out), jax.tree_util.tree_leaves(ref)):
        np.testing.assert_allclose(np.asarray(a), np.asarray(b), rtol=5e-2, atol=5e-2)

    print("KERNEL_OK")
</pallas_src>

<mosaic_0001>
module attributes {stable_mosaic.version = 11 : i64} {
  func.func @commnet_kernel(%arg0: memref<8x512xf32, #tpu.memory_space<vmem>>, %arg1: memref<448x128xf32, #tpu.memory_space<vmem>>, %arg2: memref<8x512xf32, #tpu.memory_space<vmem>>) attributes {dimension_semantics = [], scalar_prefetch = 0 : i64, scratch_operands = 0 : i64, tpu.core_type = #tpu.core_type<tc>} {
    %c0 = arith.constant 0 : index
    %c0_0 = arith.constant 0 : index
    %0 = vector.load %arg0[%c0, %c0_0] : memref<8x512xf32, #tpu.memory_space<vmem>>, vector<8x16xf32>
    %c0_1 = arith.constant 0 : index
    %c128 = arith.constant 128 : index
    %1 = vector.load %arg0[%c0_1, %c128] : memref<8x512xf32, #tpu.memory_space<vmem>>, vector<8x32xf32>
    %c0_2 = arith.constant 0 : index
    %c256 = arith.constant 256 : index
    %2 = vector.load %arg0[%c0_2, %c256] : memref<8x512xf32, #tpu.memory_space<vmem>>, vector<8x32xf32>
    %c0_3 = arith.constant 0 : index
    %c384 = arith.constant 384 : index
    %3 = vector.load %arg0[%c0_3, %c384] : memref<8x512xf32, #tpu.memory_space<vmem>>, vector<8x1xf32>
    %c0_4 = arith.constant 0 : index
    %c0_5 = arith.constant 0 : index
    %4 = vector.load %arg1[%c0_4, %c0_5] : memref<448x128xf32, #tpu.memory_space<vmem>>, vector<16x32xf32>
    %cst = arith.constant dense<0.000000e+00> : vector<8x32xf32>
    %5 = tpu.matmul %0, %4, %cst {dimension_numbers = #tpu.dot_dimension_numbers<[1], [0], [0], [1], [0, 0, 1, 1], [], []>} : vector<8x16xf32>, vector<16x32xf32>, vector<8x32xf32> -> vector<8x32xf32>
    %c16 = arith.constant 16 : index
    %c0_6 = arith.constant 0 : index
    %6 = vector.load %arg1[%c16, %c0_6] : memref<448x128xf32, #tpu.memory_space<vmem>>, vector<8x32xf32>
    %7 = arith.addf %5, %6 : vector<8x32xf32>
    %cst_7 = arith.constant 0.000000e+00 : f32
    %8 = vector.broadcast %cst_7 : f32 to vector<8x32xf32>
    %9 = arith.maximumf %7, %8 : vector<8x32xf32>
    %c24 = arith.constant 24 : index
    %c0_8 = arith.constant 0 : index
    %10 = vector.load %arg1[%c24, %c0_8] : memref<448x128xf32, #tpu.memory_space<vmem>>, vector<32x32xf32>
    %cst_9 = arith.constant dense<0.000000e+00> : vector<8x32xf32>
    %11 = tpu.matmul %9, %10, %cst_9 {dimension_numbers = #tpu.dot_dimension_numbers<[1], [0], [0], [1], [0, 0, 1, 1], [], []>} : vector<8x32xf32>, vector<32x32xf32>, vector<8x32xf32> -> vector<8x32xf32>
    %c56 = arith.constant 56 : index
    %c0_10 = arith.constant 0 : index
    %12 = vector.load %arg1[%c56, %c0_10] : memref<448x128xf32, #tpu.memory_space<vmem>>, vector<8x32xf32>
    %13 = arith.addf %11, %12 : vector<8x32xf32>
    %c64 = arith.constant 64 : index
    %c0_11 = arith.constant 0 : index
    %14 = vector.load %arg1[%c64, %c0_11] : memref<448x128xf32, #tpu.memory_space<vmem>>, vector<32x64xf32>
    %c96 = arith.constant 96 : index
    %c0_12 = arith.constant 0 : index
    %15 = vector.load %arg1[%c96, %c0_12] : memref<448x128xf32, #tpu.memory_space<vmem>>, vector<8x64xf32>
    %c216 = arith.constant 216 : index
    %c0_13 = arith.constant 0 : index
    %16 = vector.load %arg1[%c216, %c0_13] : memref<448x128xf32, #tpu.memory_space<vmem>>, vector<64x128xf32>
    %c184 = arith.constant 184 : index
    %c0_14 = arith.constant 0 : index
    %17 = vector.load %arg1[%c184, %c0_14] : memref<448x128xf32, #tpu.memory_space<vmem>>, vector<32x128xf32>
    %cst_15 = arith.constant dense<0.000000e+00> : vector<8x128xf32>
    %18 = tpu.matmul %13, %17, %cst_15 {dimension_numbers = #tpu.dot_dimension_numbers<[1], [0], [0], [1], [0, 0, 1, 1], [], []>} : vector<8x32xf32>, vector<32x128xf32>, vector<8x128xf32> -> vector<8x128xf32>
    %c280 = arith.constant 280 : index
    %c0_16 = arith.constant 0 : index
    %19 = vector.load %arg1[%c280, %c0_16] : memref<448x128xf32, #tpu.memory_space<vmem>>, vector<8x128xf32>
    %20 = arith.addf %18, %19 : vector<8x128xf32>
    %cst_17 = arith.constant dense<0.000000e+00> : vector<8x64xf32>
    %21 = tpu.matmul %1, %14, %cst_17 {dimension_numbers = #tpu.dot_dimension_numbers<[1], [0], [0], [1], [0, 0, 1, 1], [], []>} : vector<8x32xf32>, vector<32x64xf32>, vector<8x64xf32> -> vector<8x64xf32>
    %22 = vector.broadcast %3 : vector<8x1xf32> to vector<8x64xf32>
    %23 = arith.mulf %22, %21 : vector<8x64xf32>
    %24 = vector.extract_strided_slice %21 {offsets = [0, 0], sizes = [8, 16], strides = [1, 1]} : vector<8x64xf32> to vector<8x16xf32>
    %25 = vector.extract_strided_slice %15 {offsets = [0, 0], sizes = [8, 16], strides = [1, 1]} : vector<8x64xf32> to vector<8x16xf32>
    %26 = arith.addf %24, %25 : vector<8x16xf32>
    %27 = vector.extract_strided_slice %23 {offsets = [0, 16], sizes = [8, 16], strides = [1, 1]} : vector<8x64xf32> to vector<8x16xf32>
    %28 = vector.extract_strided_slice %15 {offsets = [0, 16], sizes = [8, 16], strides = [1, 1]} : vector<8x64xf32> to vector<8x16xf32>
    %29 = arith.addf %27, %28 : vector<8x16xf32>
    %30 = vector.extract_strided_slice %23 {offsets = [0, 32], sizes = [8, 32], strides = [1, 1]} : vector<8x64xf32> to vector<8x32xf32>
    %31 = vector.extract_strided_slice %15 {offsets = [0, 32], sizes = [8, 32], strides = [1, 1]} : vector<8x64xf32> to vector<8x32xf32>
    %32 = arith.addf %30, %31 : vector<8x32xf32>
    %cst_18 = arith.constant dense<0.000000e+00> : vector<8x8xf32>
    %33 = tpu.matmul %26, %29, %cst_18 {dimension_numbers = #tpu.dot_dimension_numbers<[1], [1], [0], [0], [0, 0, 1, 0], [], []>} : vector<8x16xf32>, vector<8x16xf32>, vector<8x8xf32> -> vector<8x8xf32>
    %cst_19 = arith.constant 0.176776692 : f32
    %34 = vector.broadcast %cst_19 : f32 to vector<8x8xf32>
    %35 = arith.mulf %33, %34 : vector<8x8xf32>
    %cst_20 = arith.constant dense<0xFF800000> : vector<8xf32>
    %36 = vector.multi_reduction <maximumf>, %35, %cst_20 [1] : vector<8x8xf32> to vector<8xf32>
    %37 = vector.shape_cast %36 : vector<8xf32> to vector<8x1xf32>
    %38 = vector.broadcast %37 : vector<8x1xf32> to vector<8x8xf32>
    %39 = arith.subf %35, %38 : vector<8x8xf32>
    %40 = math.exp %39 : vector<8x8xf32>
    %cst_21 = arith.constant dense<0.000000e+00> : vector<8xf32>
    %41 = vector.multi_reduction <add>, %40, %cst_21 [1] : vector<8x8xf32> to vector<8xf32>
    %42 = vector.shape_cast %41 : vector<8xf32> to vector<8x1xf32>
    %43 = tpu.reciprocal %42 {approx = true} : vector<8x1xf32> -> vector<8x1xf32>
    %44 = vector.broadcast %43 : vector<8x1xf32> to vector<8x8xf32>
    %45 = arith.mulf %40, %44 : vector<8x8xf32>
    %cst_22 = arith.constant dense<0.000000e+00> : vector<8x32xf32>
    %46 = tpu.matmul %45, %32, %cst_22 {dimension_numbers = #tpu.dot_dimension_numbers<[1], [0], [0], [1], [0, 0, 1, 1], [], []>} : vector<8x8xf32>, vector<8x32xf32>, vector<8x32xf32> -> vector<8x32xf32>
    %c104 = arith.constant 104 : index
    %c0_23 = arith.constant 0 : index
    %47 = vector.load %arg1[%c104, %c0_23] : memref<448x128xf32, #tpu.memory_space<vmem>>, vector<32x32xf32>
    %cst_24 = arith.constant dense<0.000000e+00> : vector<8x32xf32>
    %48 = tpu.matmul %46, %47, %cst_24 {dimension_numbers = #tpu.dot_dimension_numbers<[1], [0], [0], [1], [0, 0, 1, 1], [], []>} : vector<8x32xf32>, vector<32x32xf32>, vector<8x32xf32> -> vector<8x32xf32>
    %c136 = arith.constant 136 : index
    %c0_25 = arith.constant 0 : index
    %49 = vector.load %arg1[%c136, %c0_25] : memref<448x128xf32, #tpu.memory_space<vmem>>, vector<8x32xf32>
    %50 = arith.addf %48, %49 : vector<8x32xf32>
    %51 = tpu.concatenate %50, %1 in 1 : vector<8x32xf32>, vector<8x32xf32> -> vector<8x64xf32>
    %cst_26 = arith.constant dense<0.000000e+00> : vector<8x128xf32>
    %52 = tpu.matmul %51, %16, %cst_26 {dimension_numbers = #tpu.dot_dimension_numbers<[1], [0], [0], [1], [0, 0, 1, 1], [], []>} : vector<8x64xf32>, vector<64x128xf32>, vector<8x128xf32> -> vector<8x128xf32>
    %53 = arith.addf %20, %52 : vector<8x128xf32>
    %54 = vector.extract_strided_slice %53 {offsets = [0, 0], sizes = [8, 32], strides = [1, 1]} : vector<8x128xf32> to vector<8x32xf32>
    %55 = arith.negf %54 : vector<8x32xf32>
    %56 = math.exp %55 : vector<8x32xf32>
    %cst_27 = arith.constant 1.000000e+00 : f32
    %57 = vector.broadcast %cst_27 : f32 to vector<8x32xf32>
    %58 = arith.addf %57, %56 : vector<8x32xf32>
    %59 = arith.divf %57, %58 : vector<8x32xf32>
    %60 = vector.extract_strided_slice %53 {offsets = [0, 32], sizes = [8, 32], strides = [1, 1]} : vector<8x128xf32> to vector<8x32xf32>
    %61 = arith.negf %60 : vector<8x32xf32>
    %62 = math.exp %61 : vector<8x32xf32>
    %cst_28 = arith.constant 1.000000e+00 : f32
    %63 = vector.broadcast %cst_28 : f32 to vector<8x32xf32>
    %64 = arith.addf %63, %62 : vector<8x32xf32>
    %65 = arith.divf %63, %64 : vector<8x32xf32>
    %66 = vector.extract_strided_slice %53 {offsets = [0, 64], sizes = [8, 32], strides = [1, 1]} : vector<8x128xf32> to vector<8x32xf32>
    %67 = math.tanh %66 : vector<8x32xf32>
    %68 = vector.extract_strided_slice %53 {offsets = [0, 96], sizes = [8, 32], strides = [1, 1]} : vector<8x128xf32> to vector<8x32xf32>
    %69 = arith.negf %68 : vector<8x32xf32>
    %70 = math.exp %69 : vector<8x32xf32>
    %cst_29 = arith.constant 1.000000e+00 : f32
    %71 = vector.broadcast %cst_29 : f32 to vector<8x32xf32>
    %72 = arith.addf %71, %70 : vector<8x32xf32>
    %73 = arith.divf %71, %72 : vector<8x32xf32>
    %74 = arith.mulf %65, %2 : vector<8x32xf32>
    %75 = arith.mulf %59, %67 : vector<8x32xf32>
    %76 = arith.addf %74, %75 : vector<8x32xf32>
    %77 = math.tanh %76 : vector<8x32xf32>
    %78 = arith.mulf %73, %77 : vector<8x32xf32>
    %cst_30 = arith.constant dense<0.000000e+00> : vector<8x64xf32>
    %79 = tpu.matmul %78, %14, %cst_30 {dimension_numbers = #tpu.dot_dimension_numbers<[1], [0], [0], [1], [0, 0, 1, 1], [], []>} : vector<8x32xf32>, vector<32x64xf32>, vector<8x64xf32> -> vector<8x64xf32>
    %80 = vector.broadcast %3 : vector<8x1xf32> to vector<8x64xf32>
    %81 = arith.mulf %80, %79 : vector<8x64xf32>
    %82 = vector.extract_strided_slice %79 {offsets = [0, 0], sizes = [8, 16], strides = [1, 1]} : vector<8x64xf32> to vector<8x16xf32>
    %83 = vector.extract_strided_slice %15 {offsets = [0, 0], sizes = [8, 16], strides = [1, 1]} : vector<8x64xf32> to vector<8x16xf32>
    %84 = arith.addf %82, %83 : vector<8x16xf32>
    %85 = vector.extract_strided_slice %81 {offsets = [0, 16], sizes = [8, 16], strides = [1, 1]} : vector<8x64xf32> to vector<8x16xf32>
    %86 = vector.extract_strided_slice %15 {offsets = [0, 16], sizes = [8, 16], strides = [1, 1]} : vector<8x64xf32> to vector<8x16xf32>
    %87 = arith.addf %85, %86 : vector<8x16xf32>
    %88 = vector.extract_strided_slice %81 {offsets = [0, 32], sizes = [8, 32], strides = [1, 1]} : vector<8x64xf32> to vector<8x32xf32>
    %89 = vector.extract_strided_slice %15 {offsets = [0, 32], sizes = [8, 32], strides = [1, 1]} : vector<8x64xf32> to vector<8x32xf32>
    %90 = arith.addf %88, %89 : vector<8x32xf32>
    %cst_31 = arith.constant dense<0.000000e+00> : vector<8x8xf32>
    %91 = tpu.matmul %84, %87, %cst_31 {dimension_numbers = #tpu.dot_dimension_numbers<[1], [1], [0], [0], [0, 0, 1, 0], [], []>} : vector<8x16xf32>, vector<8x16xf32>, vector<8x8xf32> -> vector<8x8xf32>
    %cst_32 = arith.constant 0.176776692 : f32
    %92 = vector.broadcast %cst_32 : f32 to vector<8x8xf32>
    %93 = arith.mulf %91, %92 : vector<8x8xf32>
    %cst_33 = arith.constant dense<0xFF800000> : vector<8xf32>
    %94 = vector.multi_reduction <maximumf>, %93, %cst_33 [1] : vector<8x8xf32> to vector<8xf32>
    %95 = vector.shape_cast %94 : vector<8xf32> to vector<8x1xf32>
    %96 = vector.broadcast %95 : vector<8x1xf32> to vector<8x8xf32>
    %97 = arith.subf %93, %96 : vector<8x8xf32>
    %98 = math.exp %97 : vector<8x8xf32>
    %cst_34 = arith.constant dense<0.000000e+00> : vector<8xf32>
    %99 = vector.multi_reduction <add>, %98, %cst_34 [1] : vector<8x8xf32> to vector<8xf32>
    %100 = vector.shape_cast %99 : vector<8xf32> to vector<8x1xf32>
    %101 = tpu.reciprocal %100 {approx = true} : vector<8x1xf32> -> vector<8x1xf32>
    %102 = vector.broadcast %101 : vector<8x1xf32> to vector<8x8xf32>
    %103 = arith.mulf %98, %102 : vector<8x8xf32>
    %cst_35 = arith.constant dense<0.000000e+00> : vector<8x32xf32>
    %104 = tpu.matmul %103, %90, %cst_35 {dimension_numbers = #tpu.dot_dimension_numbers<[1], [0], [0], [1], [0, 0, 1, 1], [], []>} : vector<8x8xf32>, vector<8x32xf32>, vector<8x32xf32> -> vector<8x32xf32>
    %c144 = arith.constant 144 : index
    %c0_36 = arith.constant 0 : index
    %105 = vector.load %arg1[%c144, %c0_36] : memref<448x128xf32, #tpu.memory_space<vmem>>, vector<32x32xf32>
    %cst_37 = arith.constant dense<0.000000e+00> : vector<8x32xf32>
    %106 = tpu.matmul %104, %105, %cst_37 {dimension_numbers = #tpu.dot_dimension_numbers<[1], [0], [0], [1], [0, 0, 1, 1], [], []>} : vector<8x32xf32>, vector<32x32xf32>, vector<8x32xf32> -> vector<8x32xf32>
    %c176 = arith.constant 176 : index
    %c0_38 = arith.constant 0 : index
    %107 = vector.load %arg1[%c176, %c0_38] : memref<448x128xf32, #tpu.memory_space<vmem>>, vector<8x32xf32>
    %108 = arith.addf %106, %107 : vector<8x32xf32>
    %109 = tpu.concatenate %108, %78 in 1 : vector<8x32xf32>, vector<8x32xf32> -> vector<8x64xf32>
    %cst_39 = arith.constant dense<0.000000e+00> : vector<8x128xf32>
    %110 = tpu.matmul %109, %16, %cst_39 {dimension_numbers = #tpu.dot_dimension_numbers<[1], [0], [0], [1], [0, 0, 1, 1], [], []>} : vector<8x64xf32>, vector<64x128xf32>, vector<8x128xf32> -> vector<8x128xf32>
    %111 = arith.addf %20, %110 : vector<8x128xf32>
    %112 = vector.extract_strided_slice %111 {offsets = [0, 0], sizes = [8, 32], strides = [1, 1]} : vector<8x128xf32> to vector<8x32xf32>
    %113 = arith.negf %112 : vector<8x32xf32>
    %114 = math.exp %113 : vector<8x32xf32>
    %cst_40 = arith.constant 1.000000e+00 : f32
    %115 = vector.broadcast %cst_40 : f32 to vector<8x32xf32>
    %116 = arith.addf %115, %114 : vector<8x32xf32>
    %117 = arith.divf %115, %116 : vector<8x32xf32>
    %118 = vector.extract_strided_slice %111 {offsets = [0, 32], sizes = [8, 32], strides = [1, 1]} : vector<8x128xf32> to vector<8x32xf32>
    %119 = arith.negf %118 : vector<8x32xf32>
    %120 = math.exp %119 : vector<8x32xf32>
    %cst_41 = arith.constant 1.000000e+00 : f32
    %121 = vector.broadcast %cst_41 : f32 to vector<8x32xf32>
    %122 = arith.addf %121, %120 : vector<8x32xf32>
    %123 = arith.divf %121, %122 : vector<8x32xf32>
    %124 = vector.extract_strided_slice %111 {offsets = [0, 64], sizes = [8, 32], strides = [1, 1]} : vector<8x128xf32> to vector<8x32xf32>
    %125 = math.tanh %124 : vector<8x32xf32>
    %126 = vector.extract_strided_slice %111 {offsets = [0, 96], sizes = [8, 32], strides = [1, 1]} : vector<8x128xf32> to vector<8x32xf32>
    %127 = arith.negf %126 : vector<8x32xf32>
    %128 = math.exp %127 : vector<8x32xf32>
    %cst_42 = arith.constant 1.000000e+00 : f32
    %129 = vector.broadcast %cst_42 : f32 to vector<8x32xf32>
    %130 = arith.addf %129, %128 : vector<8x32xf32>
    %131 = arith.divf %129, %130 : vector<8x32xf32>
    %132 = arith.mulf %123, %76 : vector<8x32xf32>
    %133 = arith.mulf %117, %125 : vector<8x32xf32>
    %134 = arith.addf %132, %133 : vector<8x32xf32>
    %135 = math.tanh %134 : vector<8x32xf32>
    %136 = arith.mulf %131, %135 : vector<8x32xf32>
    %c288 = arith.constant 288 : index
    %c0_43 = arith.constant 0 : index
    %137 = vector.load %arg1[%c288, %c0_43] : memref<448x128xf32, #tpu.memory_space<vmem>>, vector<32x64xf32>
    %cst_44 = arith.constant dense<0.000000e+00> : vector<8x64xf32>
    %138 = tpu.matmul %136, %137, %cst_44 {dimension_numbers = #tpu.dot_dimension_numbers<[1], [0], [0], [1], [0, 0, 1, 1], [], []>} : vector<8x32xf32>, vector<32x64xf32>, vector<8x64xf32> -> vector<8x64xf32>
    %c320 = arith.constant 320 : index
    %c0_45 = arith.constant 0 : index
    %139 = vector.load %arg1[%c320, %c0_45] : memref<448x128xf32, #tpu.memory_space<vmem>>, vector<8x64xf32>
    %140 = arith.addf %138, %139 : vector<8x64xf32>
    %141 = vector.extract_strided_slice %140 {offsets = [0, 0], sizes = [8, 32], strides = [1, 1]} : vector<8x64xf32> to vector<8x32xf32>
    %c328 = arith.constant 328 : index
    %c0_46 = arith.constant 0 : index
    %142 = vector.load %arg1[%c328, %c0_46] : memref<448x128xf32, #tpu.memory_space<vmem>>, vector<32x36xf32>
    %cst_47 = arith.constant dense<0.000000e+00> : vector<8x36xf32>
    %143 = tpu.matmul %141, %142, %cst_47 {dimension_numbers = #tpu.dot_dimension_numbers<[1], [0], [0], [1], [0, 0, 1, 1], [], []>} : vector<8x32xf32>, vector<32x36xf32>, vector<8x36xf32> -> vector<8x36xf32>
    %c360 = arith.constant 360 : index
    %c0_48 = arith.constant 0 : index
    %144 = vector.load %arg1[%c360, %c0_48] : memref<448x128xf32, #tpu.memory_space<vmem>>, vector<8x36xf32>
    %145 = arith.addf %143, %144 : vector<8x36xf32>
    %cst_49 = arith.constant 0.000000e+00 : f32
    %146 = vector.broadcast %cst_49 : f32 to vector<8x36xf32>
    %147 = arith.cmpf ogt, %145, %146 : vector<8x36xf32>
    %cst_50 = arith.constant 0.00999999977 : f32
    %148 = vector.broadcast %cst_50 : f32 to vector<8x36xf32>
    %149 = arith.mulf %148, %145 : vector<8x36xf32>
    %150 = arith.select %147, %145, %149 : vector<8x36xi1>, vector<8x36xf32>
    %151 = vector.extract_strided_slice %140 {offsets = [0, 32], sizes = [8, 32], strides = [1, 1]} : vector<8x64xf32> to vector<8x32xf32>
    %c368 = arith.constant 368 : index
    %c0_51 = arith.constant 0 : index
    %152 = vector.load %arg1[%c368, %c0_51] : memref<448x128xf32, #tpu.memory_space<vmem>>, vector<32x81xf32>
    %cst_52 = arith.constant dense<0.000000e+00> : vector<8x81xf32>
    %153 = tpu.matmul %151, %152, %cst_52 {dimension_numbers = #tpu.dot_dimension_numbers<[1], [0], [0], [1], [0, 0, 1, 1], [], []>} : vector<8x32xf32>, vector<32x81xf32>, vector<8x81xf32> -> vector<8x81xf32>
    %c400 = arith.constant 400 : index
    %c0_53 = arith.constant 0 : index
    %154 = vector.load %arg1[%c400, %c0_53] : memref<448x128xf32, #tpu.memory_space<vmem>>, vector<8x81xf32>
    %155 = arith.addf %153, %154 : vector<8x81xf32>
    %cst_54 = arith.constant 0.000000e+00 : f32
    %156 = vector.broadcast %cst_54 : f32 to vector<8x81xf32>
    %157 = arith.cmpf ogt, %155, %156 : vector<8x81xf32>
    %cst_55 = arith.constant 0.00999999977 : f32
    %158 = vector.broadcast %cst_55 : f32 to vector<8x81xf32>
    %159 = arith.mulf %158, %155 : vector<8x81xf32>
    %160 = arith.select %157, %155, %159 : vector<8x81xi1>, vector<8x81xf32>
    %c408 = arith.constant 408 : index
    %c0_56 = arith.constant 0 : index
    %161 = vector.load %arg1[%c408, %c0_56] : memref<448x128xf32, #tpu.memory_space<vmem>>, vector<32x14xf32>
    %cst_57 = arith.constant dense<0.000000e+00> : vector<8x14xf32>
    %162 = tpu.matmul %136, %161, %cst_57 {dimension_numbers = #tpu.dot_dimension_numbers<[1], [0], [0], [1], [0, 0, 1, 1], [], []>} : vector<8x32xf32>, vector<32x14xf32>, vector<8x14xf32> -> vector<8x14xf32>
    %c440 = arith.constant 440 : index
    %c0_58 = arith.constant 0 : index
    %163 = vector.load %arg1[%c440, %c0_58] : memref<448x128xf32, #tpu.memory_space<vmem>>, vector<8x14xf32>
    %164 = arith.addf %162, %163 : vector<8x14xf32>
    %165 = vector.extract_strided_slice %164 {offsets = [0, 9], sizes = [8, 5], strides = [1, 1]} : vector<8x14xf32> to vector<8x5xf32>
    %cst_59 = arith.constant dense<0xFF800000> : vector<8xf32>
    %166 = vector.multi_reduction <maximumf>, %165, %cst_59 [1] : vector<8x5xf32> to vector<8xf32>
    %167 = vector.shape_cast %166 : vector<8xf32> to vector<8x1xf32>
    %168 = vector.broadcast %167 : vector<8x1xf32> to vector<8x5xf32>
    %169 = arith.subf %165, %168 : vector<8x5xf32>
    %170 = math.exp %169 : vector<8x5xf32>
    %cst_60 = arith.constant dense<0.000000e+00> : vector<8xf32>
    %171 = vector.multi_reduction <add>, %170, %cst_60 [1] : vector<8x5xf32> to vector<8xf32>
    %172 = vector.shape_cast %171 : vector<8xf32> to vector<8x1xf32>
    %173 = math.log %172 : vector<8x1xf32>
    %174 = arith.addf %173, %167 : vector<8x1xf32>
    %175 = vector.broadcast %174 : vector<8x1xf32> to vector<8x5xf32>
    %176 = arith.subf %165, %175 : vector<8x5xf32>
    %cst_61 = arith.constant 0.000000e+00 : f32
    %177 = vector.broadcast %cst_61 : f32 to vector<8x512xf32>
    %c0_62 = arith.constant 0 : index
    %c0_63 = arith.constant 0 : index
    %178 = vector.load %arg2[%c0_62, %c0_63] : memref<8x512xf32, #tpu.memory_space<vmem>>, vector<8x512xf32>
    tpu.vector_store %arg2[%c0_62, %c0_63], %177 {strides = array<i32>} : memref<8x512xf32, #tpu.memory_space<vmem>>, vector<8x512xf32>,
    %179 = tpu.concatenate %136, %134 in 1 : vector<8x32xf32>, vector<8x32xf32> -> vector<8x64xf32>
    %c0_64 = arith.constant 0 : index
    %c0_65 = arith.constant 0 : index
    %180 = vector.load %arg2[%c0_64, %c0_65] : memref<8x512xf32, #tpu.memory_space<vmem>>, vector<8x64xf32>
    tpu.vector_store %arg2[%c0_64, %c0_65], %179 {strides = array<i32>} : memref<8x512xf32, #tpu.memory_space<vmem>>, vector<8x64xf32>,
    %c0_66 = arith.constant 0 : index
    %c128_67 = arith.constant 128 : index
    %181 = vector.load %arg2[%c0_66, %c128_67] : memref<8x512xf32, #tpu.memory_space<vmem>>, vector<8x36xf32>
    tpu.vector_store %arg2[%c0_66, %c128_67], %150 {strides = array<i32>} : memref<8x512xf32, #tpu.memory_space<vmem>>, vector<8x36xf32>,
    %c0_68 = arith.constant 0 : index
    %c256_69 = arith.constant 256 : index
    %182 = vector.load %arg2[%c0_68, %c256_69] : memref<8x512xf32, #tpu.memory_space<vmem>>, vector<8x81xf32>
    tpu.vector_store %arg2[%c0_68, %c256_69], %160 {strides = array<i32>} : memref<8x512xf32, #tpu.memory_space<vmem>>, vector<8x81xf32>,
    %183 = vector.extract_strided_slice %164 {offsets = [0, 0], sizes = [8, 9], strides = [1, 1]} : vector<8x14xf32> to vector<8x9xf32>
    %184 = tpu.concatenate %183, %176 in 1 : vector<8x9xf32>, vector<8x5xf32> -> vector<8x14xf32>
    %c0_70 = arith.constant 0 : index
    %c384_71 = arith.constant 384 : index
    %185 = vector.load %arg2[%c0_70, %c384_71] : memref<8x512xf32, #tpu.memory_space<vmem>>, vector<8x14xf32>
    tpu.vector_store %arg2[%c0_70, %c384_71], %184 {strides = array<i32>} : memref<8x512xf32, #tpu.memory_space<vmem>>, vector<8x14xf32>,
    return
  }
}

</mosaic_0001>

<llo_original>
// kernel: commnet_forward.1
$region0: #{commnet_forward.1}
  #allocation0 [shape = 'u32[]', space=smem, size = 0x4, offset = 0x4, fixed_abs, tag = 'smem constant byte address 0x4 - core index']
  #allocation1 [shape = 'u32[144,128]{1,0:T(1,128)}', space=vmem, size = 0x12000, scoped, tag = 'internal scratch']
  %s0 = inlined_call_operand.vmem [shape: f32[8,512], index: 0, kind: input, shape index: {}]
  %s1 = inlined_call_operand.hbm [shape: f32[448,128], index: 1, kind: input, shape index: {}]
  %s2 = inlined_call_operand.vmem [shape: f32[8,512], index: 2, kind: output, shape index: {}]
  %s3 = sld [smem:[#allocation0]]
  $region22: #{commnet_forward.1} parent=0
    _
  %s5 = ssub.s32 1, %s3
  %s6 = scalar_select 0, %s5, %s3
  $region1: #{commnet_forward.1} parent=0
    #allocation2 [shape = 'u8[229376]{0}', space=vmem, size = 0x38000, scoped, tag = 'input window, operand 1, single buffered']
    #allocation3 [shape = 's32[1]{0}', space=sflag, size = 0x4, scoped, tag = 'scoped memory for commnet_forward.1']
    %7 = vsyncpa [#allocation3], 0
    // Predicated region
    $region2: #{commnet_forward.1} parent=1 // pred_check
      _
    $region3: #{commnet_forward.1} parent=1 // pred_check_branch
      %9 = sbr.rel (0) target = $region5
    $region4: #{commnet_forward.1} parent=1 // pred_region
      _
    $region5: #{commnet_forward.1} parent=1 // pred_fallthru
      _
    // Predicated region
    $region6: #{commnet_forward.1} parent=1 // pred_check
      _
    $region7: #{commnet_forward.1} parent=1 // pred_check_branch
      %11 = sbr.rel (0) target = $region9
    $region8: #{commnet_forward.1} parent=1 // pred_region
      %s13 = ssub.s32 7168, 7168
      %14 = vsyncadd [#allocation3], %s13
      %s15 = sshll.u32 [#allocation2], 4
      %s16 = int_to_ptr.vmem [resolvable:$true] %s15
      %21 = dma.hbm_to_vmem [thread:$0]  %s1, 7168, %s16, [#allocation3], 128, 128, 8
    $region9: #{commnet_forward.1} parent=1 // pred_fallthru
      _
    // Predicated region
    $region10: #{commnet_forward.1} parent=1 // pred_check
      _
    $region11: #{commnet_forward.1} parent=1 // pred_check_branch
      %23 = sbr.rel (0) target = $region13
    $region12: #{commnet_forward.1} parent=1 // pred_region
      %24 = dma.done [#allocation3], 7168
    $region13: #{commnet_forward.1} parent=1 // pred_fallthru
      _
    %v25 = vld [vmem:[%s0] sm:$0xff]
    %v26 = vld [vmem:[%s0 + $0x8] sm:$0xff]
    %v27 = vld [vmem:[%s0 + $0x10] sm:$0xff]
    %v28 = vld [vmem:[%s0 + $0x18] sm:$0xff]
    %v29 = vld [vmem:[#allocation2] sm:$0xff]
    %v30 = vld [vmem:[#allocation2 + $0x8] sm:$0xff]
    %v31 = vld [vmem:[#allocation2 + $0x10] sm:$0xff]
    %vm32 = vcmask 130048
    %v34 = vsel %vm32, %v25, 0
    %36 = vmatprep.subr.mxu0 0.0
    %37 = vmatpush1.msra.mxu0 0.0
    %38 = vmatprep.subr.mxu0 0.0
    %39 = vmatpush1.msra.mxu0 0.0
    %40 = vmatprep.subr.mxu0 0.0
    %41 = vmatpush1.msra.mxu0 0.0
    %42 = vmatprep.subr.mxu0 0.0
    %43 = vmatpush1.msra.mxu0 0.0
    %44 = vmatprep.subr.mxu0 0.0
    %45 = vmatpush1.msra.mxu0 0.0
    %46 = vmatprep.subr.mxu0 0.0
    %47 = vmatpush1.msra.mxu0 0.0
    %48 = vmatprep.subr.mxu0 0.0
    %49 = vmatpush1.msra.mxu0 0.0
    %50 = vmatprep.subr.mxu0 0.0
    %51 = vmatpush1.msra.mxu0 0.0
    %52 = vmatprep.subr.mxu0 0.0
    %53 = vmatpush1.msra.mxu0 0.0
    %54 = vmatprep.subr.mxu0 0.0
    %55 = vmatpush1.msra.mxu0 0.0
    %56 = vmatprep.subr.mxu0 0.0
    %57 = vmatpush1.msra.mxu0 0.0
    %58 = vmatprep.subr.mxu0 0.0
    %59 = vmatpush1.msra.mxu0 0.0
    %60 = vmatprep.subr.mxu0 0.0
    %61 = vmatpush1.msra.mxu0 0.0
    %62 = vmatprep.subr.mxu0 0.0
    %63 = vmatpush1.msra.mxu0 0.0
    %64 = vmatprep.subr.mxu0 0.0
    %65 = vmatpush1.msra.mxu0 %v30
    %66 = vmatprep.subr.mxu0 0.0
    %67 = vmatpush1.msra.mxu0 %v29
    %68 = vmatprep.subr.mxu0 0.0
    %69 = vmatpush2.msra.mxu0 0.0
    %70 = vmatprep.subr.mxu0 0.0
    %71 = vmatpush2.msra.mxu0 0.0
    %72 = vmatprep.subr.mxu0 0.0
    %73 = vmatpush2.msra.mxu0 0.0
    %74 = vmatprep.subr.mxu0 0.0
    %75 = vmatpush2.msra.mxu0 0.0
    %76 = vmatprep.subr.mxu0 0.0
    %77 = vmatpush2.msra.mxu0 0.0
    %78 = vmatprep.subr.mxu0 0.0
    %79 = vmatpush2.msra.mxu0 0.0
    %80 = vmatprep.subr.mxu0 0.0
    %81 = vmatpush2.msra.mxu0 0.0
    %82 = vmatprep.subr.mxu0 0.0
    %83 = vmatpush2.msra.mxu0 0.0
    %84 = vmatprep.subr.mxu0 0.0
    %85 = vmatpush2.msra.mxu0 0.0
    %86 = vmatprep.subr.mxu0 0.0
    %87 = vmatpush2.msra.mxu0 0.0
    %88 = vmatprep.subr.mxu0 0.0
    %89 = vmatpush2.msra.mxu0 0.0
    %90 = vmatprep.subr.mxu0 0.0
    %91 = vmatpush2.msra.mxu0 0.0
    %92 = vmatprep.subr.mxu0 0.0
    %93 = vmatpush2.msra.mxu0 0.0
    %94 = vmatprep.subr.mxu0 0.0
    %95 = vmatpush2.msra.mxu0 0.0
    %96 = vmatprep.subr.mxu0 0.0
    %97 = vmatpush2.msra.mxu0 0.0
    %98 = vmatprep.subr.mxu0 0.0
    %99 = vmatpush2.msra.mxu0 0.0
    %100 = vmatprep.mubr.f32.mxu0 0.0
    %101 = vmatmul.mubr.f32.gmra.mxu0 %v34
    %v102 = vpop.f32.mrf.mxu0
    %v103 = vadd.f32 %v31, %v102
    %v104 = vpop.f32.mrf.mxu0
    %105 = vdwg.mxu0
    %v106 = vmax.f32 %v103, 0.0
    %v107 = vld [vmem:[#allocation2 + $0x18] sm:$0xff]
    %v108 = vld [vmem:[#allocation2 + $0x20] sm:$0xff]
    %v109 = vld [vmem:[#allocation2 + $0x28] sm:$0xff]
    %v110 = vld [vmem:[#allocation2 + $0x30] sm:$0xff]
    %v111 = vld [vmem:[#allocation2 + $0x38] sm:$0xff]
    %vm112 = vcmask 261120
    %v114 = vsel %vm112, %v106, 0
    %116 = vmatprep.subr.mxu0 0.0
    %117 = vmatpush1.msra.mxu0 0.0
    %118 = vmatprep.subr.mxu0 0.0
    %119 = vmatpush1.msra.mxu0 0.0
    %120 = vmatprep.subr.mxu0 0.0
    %121 = vmatpush1.msra.mxu0 0.0
    %122 = vmatprep.subr.mxu0 0.0
    %123 = vmatpush1.msra.mxu0 0.0
    %124 = vmatprep.subr.mxu0 0.0
    %125 = vmatpush1.msra.mxu0 0.0
    %126 = vmatprep.subr.mxu0 0.0
    %127 = vmatpush1.msra.mxu0 0.0
    %128 = vmatprep.subr.mxu0 0.0
    %129 = vmatpush1.msra.mxu0 0.0
    %130 = vmatprep.subr.mxu0 0.0
    %131 = vmatpush1.msra.mxu0 0.0
    %132 = vmatprep.subr.mxu0 0.0
    %133 = vmatpush1.msra.mxu0 0.0
    %134 = vmatprep.subr.mxu0 0.0
    %135 = vmatpush1.msra.mxu0 0.0
    %136 = vmatprep.subr.mxu0 0.0
    %137 = vmatpush1.msra.mxu0 0.0
    %138 = vmatprep.subr.mxu0 0.0
    %139 = vmatpush1.msra.mxu0 0.0
    %140 = vmatprep.subr.mxu0 0.0
    %141 = vmatpush1.msra.mxu0 %v110
    %142 = vmatprep.subr.mxu0 0.0
    %143 = vmatpush1.msra.mxu0 %v109
    %144 = vmatprep.subr.mxu0 0.0
    %145 = vmatpush1.msra.mxu0 %v108
    %146 = vmatprep.subr.mxu0 0.0
    %147 = vmatpush1.msra.mxu0 %v107
    %148 = vmatprep.subr.mxu0 0.0
    %149 = vmatpush2.msra.mxu0 0.0
    %150 = vmatprep.subr.mxu0 0.0
    %151 = vmatpush2.msra.mxu0 0.0
    %152 = vmatprep.subr.mxu0 0.0
    %153 = vmatpush2.msra.mxu0 0.0
    %154 = vmatprep.subr.mxu0 0.0
    %155 = vmatpush2.msra.mxu0 0.0
    %156 = vmatprep.subr.mxu0 0.0
    %157 = vmatpush2.msra.mxu0 0.0
    %158 = vmatprep.subr.mxu0 0.0
    %159 = vmatpush2.msra.mxu0 0.0
    %160 = vmatprep.subr.mxu0 0.0
    %161 = vmatpush2.msra.mxu0 0.0
    %162 = vmatprep.subr.mxu0 0.0
    %163 = vmatpush2.msra.mxu0 0.0
    %164 = vmatprep.subr.mxu0 0.0
    %165 = vmatpush2.msra.mxu0 0.0
    %166 = vmatprep.subr.mxu0 0.0
    %167 = vmatpush2.msra.mxu0 0.0
    %168 = vmatprep.subr.mxu0 0.0
    %169 = vmatpush2.msra.mxu0 0.0
    %170 = vmatprep.subr.mxu0 0.0
    %171 = vmatpush2.msra.mxu0 0.0
    %172 = vmatprep.subr.mxu0 0.0
    %173 = vmatpush2.msra.mxu0 0.0
    %174 = vmatprep.subr.mxu0 0.0
    %175 = vmatpush2.msra.mxu0 0.0
    %176 = vmatprep.subr.mxu0 0.0
    %177 = vmatpush2.msra.mxu0 0.0
    %178 = vmatprep.subr.mxu0 0.0
    %179 = vmatpush2.msra.mxu0 0.0
    %180 = vmatprep.mubr.f32.mxu0 0.0
    %181 = vmatmul.mubr.f32.gmra.mxu0 %v114
    %v182 = vpop.f32.mrf.mxu0
    %v183 = vadd.f32 %v111, %v182
    %v184 = vpop.f32.mrf.mxu0
    %185 = vdwg.mxu0
    %v186 = vld [vmem:[#allocation2 + $0x40] sm:$0xff]
    %v187 = vld [vmem:[#allocation2 + $0x48] sm:$0xff]
    %v188 = vld [vmem:[#allocation2 + $0x50] sm:$0xff]
    %v189 = vld [vmem:[#allocation2 + $0x58] sm:$0xff]
    %v190 = vld [vmem:[#allocation2 + $0x60] sm:$0xff]
    %v191 = vld [vmem:[#allocation2 + $0xd8] sm:$0xff]
    %v192 = vld [vmem:[#allocation2 + $0xe0] sm:$0xff]
    %v193 = vld [vmem:[#allocation2 + $0xe8] sm:$0xff]
    %v194 = vld [vmem:[#allocation2 + $0xf0] sm:$0xff]
    %v195 = vld [vmem:[#allocation2 + $0xf8] sm:$0xff]
    %v196 = vld [vmem:[#allocation2 + $0x100] sm:$0xff]
    %v197 = vld [vmem:[#allocation2 + $0x108] sm:$0xff]
    %v198 = vld [vmem:[#allocation2 + $0x110] sm:$0xff]
    %v199 = vld [vmem:[#allocation2 + $0xb8] sm:$0xff]
    %v200 = vld [vmem:[#allocation2 + $0xc0] sm:$0xff]
    %v201 = vld [vmem:[#allocation2 + $0xc8] sm:$0xff]
    %v202 = vld [vmem:[#allocation2 + $0xd0] sm:$0xff]
    %v203 = vld [vmem:[#allocation2 + $0x118] sm:$0xff]
    %v205 = vsel %vm112, %v183, 0
    %207 = vmatprep.subr.mxu0 0.0
    %208 = vmatpush1.msra.mxu0 0.0
    %209 = vmatprep.subr.mxu0 0.0
    %210 = vmatpush1.msra.mxu0 0.0
    %211 = vmatprep.subr.mxu0 0.0
    %212 = vmatpush1.msra.mxu0 0.0
    %213 = vmatprep.subr.mxu0 0.0
    %214 = vmatpush1.msra.mxu0 0.0
    %215 = vmatprep.subr.mxu0 0.0
    %216 = vmatpush1.msra.mxu0 0.0
    %217 = vmatprep.subr.mxu0 0.0
    %218 = vmatpush1.msra.mxu0 0.0
    %219 = vmatprep.subr.mxu0 0.0
    %220 = vmatpush1.msra.mxu0 0.0
    %221 = vmatprep.subr.mxu0 0.0
    %222 = vmatpush1.msra.mxu0 0.0
    %223 = vmatprep.subr.mxu0 0.0
    %224 = vmatpush1.msra.mxu0 0.0
    %225 = vmatprep.subr.mxu0 0.0
    %226 = vmatpush1.msra.mxu0 0.0
    %227 = vmatprep.subr.mxu0 0.0
    %228 = vmatpush1.msra.mxu0 0.0
    %229 = vmatprep.subr.mxu0 0.0
    %230 = vmatpush1.msra.mxu0 0.0
    %231 = vmatprep.subr.mxu0 0.0
    %232 = vmatpush1.msra.mxu0 %v202
    %233 = vmatprep.subr.mxu0 0.0
    %234 = vmatpush1.msra.mxu0 %v201
    %235 = vmatprep.subr.mxu0 0.0
    %236 = vmatpush1.msra.mxu0 %v200
    %237 = vmatprep.subr.mxu0 0.0
    %238 = vmatpush1.msra.mxu0 %v199
    %239 = vmatprep.subr.mxu0 0.0
    %240 = vmatpush2.msra.mxu0 0.0
    %241 = vmatprep.subr.mxu0 0.0
    %242 = vmatpush2.msra.mxu0 0.0
    %243 = vmatprep.subr.mxu0 0.0
    %244 = vmatpush2.msra.mxu0 0.0
    %245 = vmatprep.subr.mxu0 0.0
    %246 = vmatpush2.msra.mxu0 0.0
    %247 = vmatprep.subr.mxu0 0.0
    %248 = vmatpush2.msra.mxu0 0.0
    %249 = vmatprep.subr.mxu0 0.0
    %250 = vmatpush2.msra.mxu0 0.0
    %251 = vmatprep.subr.mxu0 0.0
    %252 = vmatpush2.msra.mxu0 0.0
    %253 = vmatprep.subr.mxu0 0.0
    %254 = vmatpush2.msra.mxu0 0.0
    %255 = vmatprep.subr.mxu0 0.0
    %256 = vmatpush2.msra.mxu0 0.0
    %257 = vmatprep.subr.mxu0 0.0
    %258 = vmatpush2.msra.mxu0 0.0
    %259 = vmatprep.subr.mxu0 0.0
    %260 = vmatpush2.msra.mxu0 0.0
    %261 = vmatprep.subr.mxu0 0.0
    %262 = vmatpush2.msra.mxu0 0.0
    %263 = vmatprep.subr.mxu0 0.0
    %264 = vmatpush2.msra.mxu0 0.0
    %265 = vmatprep.subr.mxu0 0.0
    %266 = vmatpush2.msra.mxu0 0.0
    %267 = vmatprep.subr.mxu0 0.0
    %268 = vmatpush2.msra.mxu0 0.0
    %269 = vmatprep.subr.mxu0 0.0
    %270 = vmatpush2.msra.mxu0 0.0
    %271 = vmatprep.mubr.f32.mxu0 0.0
    %272 = vmatmul.mubr.f32.gmra.mxu0 %v205
    %v273 = vpop.f32.mrf.mxu0
    %v274 = vadd.f32 %v203, %v273
    %v275 = vpop.f32.mrf.mxu0
    %276 = vdwg.mxu0
    %v278 = vsel %vm112, %v26, 0
    %280 = vmatprep.subr.mxu0 0.0
    %281 = vmatpush1.msra.mxu0 0.0
    %282 = vmatprep.subr.mxu0 0.0
    %283 = vmatpush1.msra.mxu0 0.0
    %284 = vmatprep.subr.mxu0 0.0
    %285 = vmatpush1.msra.mxu0 0.0
    %286 = vmatprep.subr.mxu0 0.0
    %287 = vmatpush1.msra.mxu0 0.0
    %288 = vmatprep.subr.mxu0 0.0
    %289 = vmatpush1.msra.mxu0 0.0
    %290 = vmatprep.subr.mxu0 0.0
    %291 = vmatpush1.msra.mxu0 0.0
    %292 = vmatprep.subr.mxu0 0.0
    %293 = vmatpush1.msra.mxu0 0.0
    %294 = vmatprep.subr.mxu0 0.0
    %295 = vmatpush1.msra.mxu0 0.0
    %296 = vmatprep.subr.mxu0 0.0
    %297 = vmatpush1.msra.mxu0 0.0
    %298 = vmatprep.subr.mxu0 0.0
    %299 = vmatpush1.msra.mxu0 0.0
    %300 = vmatprep.subr.mxu0 0.0
    %301 = vmatpush1.msra.mxu0 0.0
    %302 = vmatprep.subr.mxu0 0.0
    %303 = vmatpush1.msra.mxu0 0.0
    %304 = vmatprep.subr.mxu0 0.0
    %305 = vmatpush1.msra.mxu0 %v189
    %306 = vmatprep.subr.mxu0 0.0
    %307 = vmatpush1.msra.mxu0 %v188
    %308 = vmatprep.subr.mxu0 0.0
    %309 = vmatpush1.msra.mxu0 %v187
    %310 = vmatprep.subr.mxu0 0.0
    %311 = vmatpush1.msra.mxu0 %v186
    %312 = vmatprep.subr.mxu0 0.0
    %313 = vmatpush2.msra.mxu0 0.0
    %314 = vmatprep.subr.mxu0 0.0
    %315 = vmatpush2.msra.mxu0 0.0
    %316 = vmatprep.subr.mxu0 0.0
    %317 = vmatpush2.msra.mxu0 0.0
    %318 = vmatprep.subr.mxu0 0.0
    %319 = vmatpush2.msra.mxu0 0.0
    %320 = vmatprep.subr.mxu0 0.0
    %321 = vmatpush2.msra.mxu0 0.0
    %322 = vmatprep.subr.mxu0 0.0
    %323 = vmatpush2.msra.mxu0 0.0
    %324 = vmatprep.subr.mxu0 0.0
    %325 = vmatpush2.msra.mxu0 0.0
    %326 = vmatprep.subr.mxu0 0.0
    %327 = vmatpush2.msra.mxu0 0.0
    %328 = vmatprep.subr.mxu0 0.0
    %329 = vmatpush2.msra.mxu0 0.0
    %330 = vmatprep.subr.mxu0 0.0
    %331 = vmatpush2.msra.mxu0 0.0
    %332 = vmatprep.subr.mxu0 0.0
    %333 = vmatpush2.msra.mxu0 0.0
    %334 = vmatprep.subr.mxu0 0.0
    %335 = vmatpush2.msra.mxu0 0.0
    %336 = vmatprep.subr.mxu0 0.0
    %337 = vmatpush2.msra.mxu0 0.0
    %338 = vmatprep.subr.mxu0 0.0
    %339 = vmatpush2.msra.mxu0 0.0
    %340 = vmatprep.subr.mxu0 0.0
    %341 = vmatpush2.msra.mxu0 0.0
    %342 = vmatprep.subr.mxu0 0.0
    %343 = vmatpush2.msra.mxu0 0.0
    %344 = vmatprep.mubr.f32.mxu0 0.0
    %345 = vmatmul.mubr.f32.gmra.mxu0 %v278
    %v346 = vpop.f32.mrf.mxu0
    %v347 = vadd.f32 0.0, %v346
    %v348 = vpop.f32.mrf.mxu0
    %349 = vdwg.mxu0
    %351 = vset.pattern.permute.xlu0 0
    %352 = vperm.xlu0 %351, %v28
    %v353 = vpop.permute.xlu0 %352
    %v355 = vmul.f32 %v353, %v347
    %v356 = vadd.f32 %v347, %v190
    %v357 = vadd.f32 %v355, %v190
    %359 = vrot.lane.b32.xlu0 %v357, 112
    %v360 = vpop.permute.xlu0 %359
    %v362 = vsel %vm32, %v356, 0
    %v364 = vsel %vm32, %v360, 0
    %366 = vmatprep.subr.mxu0 0.0
    %367 = vmatpush1.xpose.msra.mxu0 0.0
    %368 = vmatprep.subr.mxu0 0.0
    %369 = vmatpush1.xpose.msra.mxu0 0.0
    %370 = vmatprep.subr.mxu0 0.0
    %371 = vmatpush1.xpose.msra.mxu0 0.0
    %372 = vmatprep.subr.mxu0 0.0
    %373 = vmatpush1.xpose.msra.mxu0 0.0
    %374 = vmatprep.subr.mxu0 0.0
    %375 = vmatpush1.xpose.msra.mxu0 0.0
    %376 = vmatprep.subr.mxu0 0.0
    %377 = vmatpush1.xpose.msra.mxu0 0.0
    %378 = vmatprep.subr.mxu0 0.0
    %379 = vmatpush1.xpose.msra.mxu0 0.0
    %380 = vmatprep.subr.mxu0 0.0
    %381 = vmatpush1.xpose.msra.mxu0 0.0
    %382 = vmatprep.subr.mxu0 0.0
    %383 = vmatpush1.xpose.msra.mxu0 0.0
    %384 = vmatprep.subr.mxu0 0.0
    %385 = vmatpush1.xpose.msra.mxu0 0.0
    %386 = vmatprep.subr.mxu0 0.0
    %387 = vmatpush1.xpose.msra.mxu0 0.0
    %388 = vmatprep.subr.mxu0 0.0
    %389 = vmatpush1.xpose.msra.mxu0 0.0
    %390 = vmatprep.subr.mxu0 0.0
    %391 = vmatpush1.xpose.msra.mxu0 0.0
    %392 = vmatprep.subr.mxu0 0.0
    %393 = vmatpush1.xpose.msra.mxu0 0.0
    %394 = vmatprep.subr.mxu0 0.0
    %395 = vmatpush1.xpose.msra.mxu0 0.0
    %396 = vmatprep.subr.mxu0 0.0
    %397 = vmatpush1.xpose.msra.mxu0 %v364
    %398 = vmatprep.subr.mxu0 0.0
    %399 = vmatpush2.xpose.msra.mxu0 0.0
    %400 = vmatprep.subr.mxu0 0.0
    %401 = vmatpush2.xpose.msra.mxu0 0.0
    %402 = vmatprep.subr.mxu0 0.0
    %403 = vmatpush2.xpose.msra.mxu0 0.0
    %404 = vmatprep.subr.mxu0 0.0
    %405 = vmatpush2.xpose.msra.mxu0 0.0
    %406 = vmatprep.subr.mxu0 0.0
    %407 = vmatpush2.xpose.msra.mxu0 0.0
    %408 = vmatprep.subr.mxu0 0.0
    %409 = vmatpush2.xpose.msra.mxu0 0.0
    %410 = vmatprep.subr.mxu0 0.0
    %411 = vmatpush2.xpose.msra.mxu0 0.0
    %412 = vmatprep.subr.mxu0 0.0
    %413 = vmatpush2.xpose.msra.mxu0 0.0
    %414 = vmatprep.subr.mxu0 0.0
    %415 = vmatpush2.xpose.msra.mxu0 0.0
    %416 = vmatprep.subr.mxu0 0.0
    %417 = vmatpush2.xpose.msra.mxu0 0.0
    %418 = vmatprep.subr.mxu0 0.0
    %419 = vmatpush2.xpose.msra.mxu0 0.0
    %420 = vmatprep.subr.mxu0 0.0
    %421 = vmatpush2.xpose.msra.mxu0 0.0
    %422 = vmatprep.subr.mxu0 0.0
    %423 = vmatpush2.xpose.msra.mxu0 0.0
    %424 = vmatprep.subr.mxu0 0.0
    %425 = vmatpush2.xpose.msra.mxu0 0.0
    %426 = vmatprep.subr.mxu0 0.0
    %427 = vmatpush2.xpose.msra.mxu0 0.0
    %428 = vmatprep.subr.mxu0 0.0
    %429 = vmatpush2.xpose.msra.mxu0 0.0
    %430 = vmatprep.mubr.f32.mxu0 0.0
    %431 = vmatmul.mubr.f32.gmra.mxu0 %v362
    %v432 = vpop.f32.mrf.mxu0
    %v433 = vadd.f32 0.0, %v432
    %v434 = vpop.f32.mrf.mxu0
    %435 = vdwg.mxu0
    %v436 = vmul.f32 %v433, 0.17677669
    %vm437 = vcmask 64512
    %v438 = vsel %vm437, %v436, -inf
    %439 = vmax.xlane.f32.xlu0 %v438
    %v440 = vpop.xlane.xlu0 %439
    %v441 = vsub.f32 %v436, %v440
    %v442 = vmul.f32 %v441, 1.442695
    %v443 = vpow.pop %v442
    %v444 = vsel %vm437, %v443, 0.0
    %445 = vadd.xlane.f32.xlu0 %v444
    %v446 = vpop.xlane.xlu0 %445
    %v447 = vrcp.pop %v446
    %v448 = vmul.f32 %v443, %v447
    %449 = vrot.lane.b32.xlu0 %v357, 96
    %v450 = vpop.permute.xlu0 %449
    %v453 = vsel %vm437, %v448, 0
    %455 = vmatprep.subr.mxu0 0.0
    %456 = vmatpush1.msra.mxu0 0.0
    %457 = vmatprep.subr.mxu0 0.0
    %458 = vmatpush1.msra.mxu0 0.0
    %459 = vmatprep.subr.mxu0 0.0
    %460 = vmatpush1.msra.mxu0 0.0
    %461 = vmatprep.subr.mxu0 0.0
    %462 = vmatpush1.msra.mxu0 0.0
    %463 = vmatprep.subr.mxu0 0.0
    %464 = vmatpush1.msra.mxu0 0.0
    %465 = vmatprep.subr.mxu0 0.0
    %466 = vmatpush1.msra.mxu0 0.0
    %467 = vmatprep.subr.mxu0 0.0
    %468 = vmatpush1.msra.mxu0 0.0
    %469 = vmatprep.subr.mxu0 0.0
    %470 = vmatpush1.msra.mxu0 0.0
    %471 = vmatprep.subr.mxu0 0.0
    %472 = vmatpush1.msra.mxu0 0.0
    %473 = vmatprep.subr.mxu0 0.0
    %474 = vmatpush1.msra.mxu0 0.0
    %475 = vmatprep.subr.mxu0 0.0
    %476 = vmatpush1.msra.mxu0 0.0
    %477 = vmatprep.subr.mxu0 0.0
    %478 = vmatpush1.msra.mxu0 0.0
    %479 = vmatprep.subr.mxu0 0.0
    %480 = vmatpush1.msra.mxu0 0.0
    %481 = vmatprep.subr.mxu0 0.0
    %482 = vmatpush1.msra.mxu0 0.0
    %483 = vmatprep.subr.mxu0 0.0
    %484 = vmatpush1.msra.mxu0 0.0
    %485 = vmatprep.subr.mxu0 0.0
    %486 = vmatpush1.msra.mxu0 %v450
    %487 = vmatprep.subr.mxu0 0.0
    %488 = vmatpush2.msra.mxu0 0.0
    %489 = vmatprep.subr.mxu0 0.0
    %490 = vmatpush2.msra.mxu0 0.0
    %491 = vmatprep.subr.mxu0 0.0
    %492 = vmatpush2.msra.mxu0 0.0
    %493 = vmatprep.subr.mxu0 0.0
    %494 = vmatpush2.msra.mxu0 0.0
    %495 = vmatprep.subr.mxu0 0.0
    %496 = vmatpush2.msra.mxu0 0.0
    %497 = vmatprep.subr.mxu0 0.0
    %498 = vmatpush2.msra.mxu0 0.0
    %499 = vmatprep.subr.mxu0 0.0
    %500 = vmatpush2.msra.mxu0 0.0
    %501 = vmatprep.subr.mxu0 0.0
    %502 = vmatpush2.msra.mxu0 0.0
    %503 = vmatprep.subr.mxu0 0.0
    %504 = vmatpush2.msra.mxu0 0.0
    %505 = vmatprep.subr.mxu0 0.0
    %506 = vmatpush2.msra.mxu0 0.0
    %507 = vmatprep.subr.mxu0 0.0
    %508 = vmatpush2.msra.mxu0 0.0
    %509 = vmatprep.subr.mxu0 0.0
    %510 = vmatpush2.msra.mxu0 0.0
    %511 = vmatprep.subr.mxu0 0.0
    %512 = vmatpush2.msra.mxu0 0.0
    %513 = vmatprep.subr.mxu0 0.0
    %514 = vmatpush2.msra.mxu0 0.0
    %515 = vmatprep.subr.mxu0 0.0
    %516 = vmatpush2.msra.mxu0 0.0
    %517 = vmatprep.subr.mxu0 0.0
    %518 = vmatpush2.msra.mxu0 0.0
    %519 = vmatprep.mubr.f32.mxu0 0.0
    %520 = vmatmul.mubr.f32.gmra.mxu0 %v453
    %v521 = vpop.f32.mrf.mxu0
    %v522 = vadd.f32 0.0, %v521
    %v523 = vpop.f32.mrf.mxu0
    %524 = vdwg.mxu0
    %v525 = vld [vmem:[#allocation2 + $0x68] sm:$0xff]
    %v526 = vld [vmem:[#allocation2 + $0x70] sm:$0xff]
    %v527 = vld [vmem:[#allocation2 + $0x78] sm:$0xff]
    %v528 = vld [vmem:[#allocation2 + $0x80] sm:$0xff]
    %v529 = vld [vmem:[#allocation2 + $0x88] sm:$0xff]
    %v531 = vsel %vm112, %v522, 0
    %533 = vmatprep.subr.mxu0 0.0
    %534 = vmatpush1.msra.mxu0 0.0
    %535 = vmatprep.subr.mxu0 0.0
    %536 = vmatpush1.msra.mxu0 0.0
    %537 = vmatprep.subr.mxu0 0.0
    %538 = vmatpush1.msra.mxu0 0.0
    %539 = vmatprep.subr.mxu0 0.0
    %540 = vmatpush1.msra.mxu0 0.0
    %541 = vmatprep.subr.mxu0 0.0
    %542 = vmatpush1.msra.mxu0 0.0
    %543 = vmatprep.subr.mxu0 0.0
    %544 = vmatpush1.msra.mxu0 0.0
    %545 = vmatprep.subr.mxu0 0.0
    %546 = vmatpush1.msra.mxu0 0.0
    %547 = vmatprep.subr.mxu0 0.0
    %548 = vmatpush1.msra.mxu0 0.0
    %549 = vmatprep.subr.mxu0 0.0
    %550 = vmatpush1.msra.mxu0 0.0
    %551 = vmatprep.subr.mxu0 0.0
    %552 = vmatpush1.msra.mxu0 0.0
    %553 = vmatprep.subr.mxu0 0.0
    %554 = vmatpush1.msra.mxu0 0.0
    %555 = vmatprep.subr.mxu0 0.0
    %556 = vmatpush1.msra.mxu0 0.0
    %557 = vmatprep.subr.mxu0 0.0
    %558 = vmatpush1.msra.mxu0 %v528
    %559 = vmatprep.subr.mxu0 0.0
    %560 = vmatpush1.msra.mxu0 %v527
    %561 = vmatprep.subr.mxu0 0.0
    %562 = vmatpush1.msra.mxu0 %v526
    %563 = vmatprep.subr.mxu0 0.0
    %564 = vmatpush1.msra.mxu0 %v525
    %565 = vmatprep.subr.mxu0 0.0
    %566 = vmatpush2.msra.mxu0 0.0
    %567 = vmatprep.subr.mxu0 0.0
    %568 = vmatpush2.msra.mxu0 0.0
    %569 = vmatprep.subr.mxu0 0.0
    %570 = vmatpush2.msra.mxu0 0.0
    %571 = vmatprep.subr.mxu0 0.0
    %572 = vmatpush2.msra.mxu0 0.0
    %573 = vmatprep.subr.mxu0 0.0
    %574 = vmatpush2.msra.mxu0 0.0
    %575 = vmatprep.subr.mxu0 0.0
    %576 = vmatpush2.msra.mxu0 0.0
    %577 = vmatprep.subr.mxu0 0.0
    %578 = vmatpush2.msra.mxu0 0.0
    %579 = vmatprep.subr.mxu0 0.0
    %580 = vmatpush2.msra.mxu0 0.0
    %581 = vmatprep.subr.mxu0 0.0
    %582 = vmatpush2.msra.mxu0 0.0
    %583 = vmatprep.subr.mxu0 0.0
    %584 = vmatpush2.msra.mxu0 0.0
    %585 = vmatprep.subr.mxu0 0.0
    %586 = vmatpush2.msra.mxu0 0.0
    %587 = vmatprep.subr.mxu0 0.0
    %588 = vmatpush2.msra.mxu0 0.0
    %589 = vmatprep.subr.mxu0 0.0
    %590 = vmatpush2.msra.mxu0 0.0
    %591 = vmatprep.subr.mxu0 0.0
    %592 = vmatpush2.msra.mxu0 0.0
    %593 = vmatprep.subr.mxu0 0.0
    %594 = vmatpush2.msra.mxu0 0.0
    %595 = vmatprep.subr.mxu0 0.0
    %596 = vmatpush2.msra.mxu0 0.0
    %597 = vmatprep.mubr.f32.mxu0 0.0
    %598 = vmatmul.mubr.f32.gmra.mxu0 %v531
    %v599 = vpop.f32.mrf.mxu0
    %v600 = vadd.f32 %v529, %v599
    %v601 = vpop.f32.mrf.mxu0
    %602 = vdwg.mxu0
    %603 = vrot.lane.b32.xlu0 %v26, 32
    %v604 = vpop.permute.xlu0 %603
    %v606 = vsel %vm112, %v600, %v604
    %vm607 = vcmask 523264
    %v609 = vsel %vm607, %v606, 0
    %611 = vmatprep.subr.mxu0 0.0
    %612 = vmatpush1.msra.mxu0 0.0
    %613 = vmatprep.subr.mxu0 0.0
    %614 = vmatpush1.msra.mxu0 0.0
    %615 = vmatprep.subr.mxu0 0.0
    %616 = vmatpush1.msra.mxu0 0.0
    %617 = vmatprep.subr.mxu0 0.0
    %618 = vmatpush1.msra.mxu0 0.0
    %619 = vmatprep.subr.mxu0 0.0
    %620 = vmatpush1.msra.mxu0 0.0
    %621 = vmatprep.subr.mxu0 0.0
    %622 = vmatpush1.msra.mxu0 0.0
    %623 = vmatprep.subr.mxu0 0.0
    %624 = vmatpush1.msra.mxu0 0.0
    %625 = vmatprep.subr.mxu0 0.0
    %626 = vmatpush1.msra.mxu0 0.0
    %627 = vmatprep.subr.mxu0 0.0
    %628 = vmatpush1.msra.mxu0 %v198
    %629 = vmatprep.subr.mxu0 0.0
    %630 = vmatpush1.msra.mxu0 %v197
    %631 = vmatprep.subr.mxu0 0.0
    %632 = vmatpush1.msra.mxu0 %v196
    %633 = vmatprep.subr.mxu0 0.0
    %634 = vmatpush1.msra.mxu0 %v195
    %635 = vmatprep.subr.mxu0 0.0
    %636 = vmatpush1.msra.mxu0 %v194
    %637 = vmatprep.subr.mxu0 0.0
    %638 = vmatpush1.msra.mxu0 %v193
    %639 = vmatprep.subr.mxu0 0.0
    %640 = vmatpush1.msra.mxu0 %v192
    %641 = vmatprep.subr.mxu0 0.0
    %642 = vmatpush1.msra.mxu0 %v191
    %643 = vmatprep.subr.mxu0 0.0
    %644 = vmatpush2.msra.mxu0 0.0
    %645 = vmatprep.subr.mxu0 0.0
    %646 = vmatpush2.msra.mxu0 0.0
    %647 = vmatprep.subr.mxu0 0.0
    %648 = vmatpush2.msra.mxu0 0.0
    %649 = vmatprep.subr.mxu0 0.0
    %650 = vmatpush2.msra.mxu0 0.0
    %651 = vmatprep.subr.mxu0 0.0
    %652 = vmatpush2.msra.mxu0 0.0
    %653 = vmatprep.subr.mxu0 0.0
    %654 = vmatpush2.msra.mxu0 0.0
    %655 = vmatprep.subr.mxu0 0.0
    %656 = vmatpush2.msra.mxu0 0.0
    %657 = vmatprep.subr.mxu0 0.0
    %658 = vmatpush2.msra.mxu0 0.0
    %659 = vmatprep.subr.mxu0 0.0
    %660 = vmatpush2.msra.mxu0 0.0
    %661 = vmatprep.subr.mxu0 0.0
    %662 = vmatpush2.msra.mxu0 0.0
    %663 = vmatprep.subr.mxu0 0.0
    %664 = vmatpush2.msra.mxu0 0.0
    %665 = vmatprep.subr.mxu0 0.0
    %666 = vmatpush2.msra.mxu0 0.0
    %667 = vmatprep.subr.mxu0 0.0
    %668 = vmatpush2.msra.mxu0 0.0
    %669 = vmatprep.subr.mxu0 0.0
    %670 = vmatpush2.msra.mxu0 0.0
    %671 = vmatprep.subr.mxu0 0.0
    %672 = vmatpush2.msra.mxu0 0.0
    %673 = vmatprep.subr.mxu0 0.0
    %674 = vmatpush2.msra.mxu0 0.0
    %675 = vmatprep.mubr.f32.mxu0 0.0
    %676 = vmatmul.mubr.f32.gmra.mxu0 %v609
    %v677 = vpop.f32.mrf.mxu0
    %v678 = vadd.f32 0.0, %v677
    %v679 = vpop.f32.mrf.mxu0
    %680 = vdwg.mxu0
    %v681 = vadd.f32 %v274, %v678
    %v682 = vxor.u32 %v681, 2147483648
    %v683 = vmul.f32 %v682, 1.442695
    %v684 = vpow.pop %v683
    %v685 = vadd.f32 %v684, 1.0
    %v686 = vrcp.pop %v685
    %v687 = vmul.f32 1.0, %v686
    %v688 = vtanh.pop %v681
    %690 = vrot.lane.b32.xlu0 %v27, 32
    %v691 = vpop.permute.xlu0 %690
    %v693 = vmul.f32 %v687, %v691
    %695 = vrot.lane.b32.xlu0 %v688, 64
    %v696 = vpop.permute.xlu0 %695
    %v698 = vmul.f32 %v687, %v696
    %700 = vrot.lane.b32.xlu0 %v698, 32
    %v701 = vpop.permute.xlu0 %700
    %v703 = vadd.f32 %v693, %v701
    %v704 = vtanh.pop %v703
    %706 = vrot.lane.b32.xlu0 %v704, 64
    %v707 = vpop.permute.xlu0 %706
    %v709 = vmul.f32 %v687, %v707
    %711 = vrot.lane.b32.xlu0 %v709, 32
    %v712 = vpop.permute.xlu0 %711
    %v713 = vsel %vm112, %v712, 0
    %715 = vmatprep.subr.mxu0 0.0
    %716 = vmatpush1.msra.mxu0 0.0
    %717 = vmatprep.subr.mxu0 0.0
    %718 = vmatpush1.msra.mxu0 0.0
    %719 = vmatprep.subr.mxu0 0.0
    %720 = vmatpush1.msra.mxu0 0.0
    %721 = vmatprep.subr.mxu0 0.0
    %722 = vmatpush1.msra.mxu0 0.0
    %723 = vmatprep.subr.mxu0 0.0
    %724 = vmatpush1.msra.mxu0 0.0
    %725 = vmatprep.subr.mxu0 0.0
    %726 = vmatpush1.msra.mxu0 0.0
    %727 = vmatprep.subr.mxu0 0.0
    %728 = vmatpush1.msra.mxu0 0.0
    %729 = vmatprep.subr.mxu0 0.0
    %730 = vmatpush1.msra.mxu0 0.0
    %731 = vmatprep.subr.mxu0 0.0
    %732 = vmatpush1.msra.mxu0 0.0
    %733 = vmatprep.subr.mxu0 0.0
    %734 = vmatpush1.msra.mxu0 0.0
    %735 = vmatprep.subr.mxu0 0.0
    %736 = vmatpush1.msra.mxu0 0.0
    %737 = vmatprep.subr.mxu0 0.0
    %738 = vmatpush1.msra.mxu0 0.0
    %739 = vmatprep.subr.mxu0 0.0
    %740 = vmatpush1.msra.mxu0 %v189
    %741 = vmatprep.subr.mxu0 0.0
    %742 = vmatpush1.msra.mxu0 %v188
    %743 = vmatprep.subr.mxu0 0.0
    %744 = vmatpush1.msra.mxu0 %v187
    %745 = vmatprep.subr.mxu0 0.0
    %746 = vmatpush1.msra.mxu0 %v186
    %747 = vmatprep.subr.mxu0 0.0
    %748 = vmatpush2.msra.mxu0 0.0
    %749 = vmatprep.subr.mxu0 0.0
    %750 = vmatpush2.msra.mxu0 0.0
    %751 = vmatprep.subr.mxu0 0.0
    %752 = vmatpush2.msra.mxu0 0.0
    %753 = vmatprep.subr.mxu0 0.0
    %754 = vmatpush2.msra.mxu0 0.0
    %755 = vmatprep.subr.mxu0 0.0
    %756 = vmatpush2.msra.mxu0 0.0
    %757 = vmatprep.subr.mxu0 0.0
    %758 = vmatpush2.msra.mxu0 0.0
    %759 = vmatprep.subr.mxu0 0.0
    %760 = vmatpush2.msra.mxu0 0.0
    %761 = vmatprep.subr.mxu0 0.0
    %762 = vmatpush2.msra.mxu0 0.0
    %763 = vmatprep.subr.mxu0 0.0
    %764 = vmatpush2.msra.mxu0 0.0
    %765 = vmatprep.subr.mxu0 0.0
    %766 = vmatpush2.msra.mxu0 0.0
    %767 = vmatprep.subr.mxu0 0.0
    %768 = vmatpush2.msra.mxu0 0.0
    %769 = vmatprep.subr.mxu0 0.0
    %770 = vmatpush2.msra.mxu0 0.0
    %771 = vmatprep.subr.mxu0 0.0
    %772 = vmatpush2.msra.mxu0 0.0
    %773 = vmatprep.subr.mxu0 0.0
    %774 = vmatpush2.msra.mxu0 0.0
    %775 = vmatprep.subr.mxu0 0.0
    %776 = vmatpush2.msra.mxu0 0.0
    %777 = vmatprep.subr.mxu0 0.0
    %778 = vmatpush2.msra.mxu0 0.0
    %779 = vmatprep.mubr.f32.mxu0 0.0
    %780 = vmatmul.mubr.f32.gmra.mxu0 %v713
    %v781 = vpop.f32.mrf.mxu0
    %v782 = vadd.f32 0.0, %v781
    %v783 = vpop.f32.mrf.mxu0
    %784 = vdwg.mxu0
    %v785 = vmul.f32 %v353, %v782
    %v786 = vadd.f32 %v782, %v190
    %v787 = vadd.f32 %v785, %v190
    %789 = vrot.lane.b32.xlu0 %v787, 112
    %v790 = vpop.permute.xlu0 %789
    %v792 = vsel %vm32, %v786, 0
    %v794 = vsel %vm32, %v790, 0
    %796 = vmatprep.subr.mxu0 0.0
    %797 = vmatpush1.xpose.msra.mxu0 0.0
    %798 = vmatprep.subr.mxu0 0.0
    %799 = vmatpush1.xpose.msra.mxu0 0.0
    %800 = vmatprep.subr.mxu0 0.0
    %801 = vmatpush1.xpose.msra.mxu0 0.0
    %802 = vmatprep.subr.mxu0 0.0
    %803 = vmatpush1.xpose.msra.mxu0 0.0
    %804 = vmatprep.subr.mxu0 0.0
    %805 = vmatpush1.xpose.msra.mxu0 0.0
    %806 = vmatprep.subr.mxu0 0.0
    %807 = vmatpush1.xpose.msra.mxu0 0.0
    %808 = vmatprep.subr.mxu0 0.0
    %809 = vmatpush1.xpose.msra.mxu0 0.0
    %810 = vmatprep.subr.mxu0 0.0
    %811 = vmatpush1.xpose.msra.mxu0 0.0
    %812 = vmatprep.subr.mxu0 0.0
    %813 = vmatpush1.xpose.msra.mxu0 0.0
    %814 = vmatprep.subr.mxu0 0.0
    %815 = vmatpush1.xpose.msra.mxu0 0.0
    %816 = vmatprep.subr.mxu0 0.0
    %817 = vmatpush1.xpose.msra.mxu0 0.0
    %818 = vmatprep.subr.mxu0 0.0
    %819 = vmatpush1.xpose.msra.mxu0 0.0
    %820 = vmatprep.subr.mxu0 0.0
    %821 = vmatpush1.xpose.msra.mxu0 0.0
    %822 = vmatprep.subr.mxu0 0.0
    %823 = vmatpush1.xpose.msra.mxu0 0.0
    %824 = vmatprep.subr.mxu0 0.0
    %825 = vmatpush1.xpose.msra.mxu0 0.0
    %826 = vmatprep.subr.mxu0 0.0
    %827 = vmatpush1.xpose.msra.mxu0 %v794
    %828 = vmatprep.subr.mxu0 0.0
    %829 = vmatpush2.xpose.msra.mxu0 0.0
    %830 = vmatprep.subr.mxu0 0.0
    %831 = vmatpush2.xpose.msra.mxu0 0.0
    %832 = vmatprep.subr.mxu0 0.0
    %833 = vmatpush2.xpose.msra.mxu0 0.0
    %834 = vmatprep.subr.mxu0 0.0
    %835 = vmatpush2.xpose.msra.mxu0 0.0
    %836 = vmatprep.subr.mxu0 0.0
    %837 = vmatpush2.xpose.msra.mxu0 0.0
    %838 = vmatprep.subr.mxu0 0.0
    %839 = vmatpush2.xpose.msra.mxu0 0.0
    %840 = vmatprep.subr.mxu0 0.0
    %841 = vmatpush2.xpose.msra.mxu0 0.0
    %842 = vmatprep.subr.mxu0 0.0
    %843 = vmatpush2.xpose.msra.mxu0 0.0
    %844 = vmatprep.subr.mxu0 0.0
    %845 = vmatpush2.xpose.msra.mxu0 0.0
    %846 = vmatprep.subr.mxu0 0.0
    %847 = vmatpush2.xpose.msra.mxu0 0.0
    %848 = vmatprep.subr.mxu0 0.0
    %849 = vmatpush2.xpose.msra.mxu0 0.0
    %850 = vmatprep.subr.mxu0 0.0
    %851 = vmatpush2.xpose.msra.mxu0 0.0
    %852 = vmatprep.subr.mxu0 0.0
    %853 = vmatpush2.xpose.msra.mxu0 0.0
    %854 = vmatprep.subr.mxu0 0.0
    %855 = vmatpush2.xpose.msra.mxu0 0.0
    %856 = vmatprep.subr.mxu0 0.0
    %857 = vmatpush2.xpose.msra.mxu0 0.0
    %858 = vmatprep.subr.mxu0 0.0
    %859 = vmatpush2.xpose.msra.mxu0 0.0
    %860 = vmatprep.mubr.f32.mxu0 0.0
    %861 = vmatmul.mubr.f32.gmra.mxu0 %v792
    %v862 = vpop.f32.mrf.mxu0
    %v863 = vadd.f32 0.0, %v862
    %v864 = vpop.f32.mrf.mxu0
    %865 = vdwg.mxu0
    %v866 = vmul.f32 %v863, 0.17677669
    %v867 = vsel %vm437, %v866, -inf
    %868 = vmax.xlane.f32.xlu0 %v867
    %v869 = vpop.xlane.xlu0 %868
    %v870 = vsub.f32 %v866, %v869
    %v871 = vmul.f32 %v870, 1.442695
    %v872 = vpow.pop %v871
    %v873 = vsel %vm437, %v872, 0.0
    %874 = vadd.xlane.f32.xlu0 %v873
    %v875 = vpop.xlane.xlu0 %874
    %v876 = vrcp.pop %v875
    %v877 = vmul.f32 %v872, %v876
    %878 = vrot.lane.b32.xlu0 %v787, 96
    %v879 = vpop.permute.xlu0 %878
    %v882 = vsel %vm437, %v877, 0
    %884 = vmatprep.subr.mxu0 0.0
    %885 = vmatpush1.msra.mxu0 0.0
    %886 = vmatprep.subr.mxu0 0.0
    %887 = vmatpush1.msra.mxu0 0.0
    %888 = vmatprep.subr.mxu0 0.0
    %889 = vmatpush1.msra.mxu0 0.0
    %890 = vmatprep.subr.mxu0 0.0
    %891 = vmatpush1.msra.mxu0 0.0
    %892 = vmatprep.subr.mxu0 0.0
    %893 = vmatpush1.msra.mxu0 0.0
    %894 = vmatprep.subr.mxu0 0.0
    %895 = vmatpush1.msra.mxu0 0.0
    %896 = vmatprep.subr.mxu0 0.0
    %897 = vmatpush1.msra.mxu0 0.0
    %898 = vmatprep.subr.mxu0 0.0
    %899 = vmatpush1.msra.mxu0 0.0
    %900 = vmatprep.subr.mxu0 0.0
    %901 = vmatpush1.msra.mxu0 0.0
    %902 = vmatprep.subr.mxu0 0.0
    %903 = vmatpush1.msra.mxu0 0.0
    %904 = vmatprep.subr.mxu0 0.0
    %905 = vmatpush1.msra.mxu0 0.0
    %906 = vmatprep.subr.mxu0 0.0
    %907 = vmatpush1.msra.mxu0 0.0
    %908 = vmatprep.subr.mxu0 0.0
    %909 = vmatpush1.msra.mxu0 0.0
    %910 = vmatprep.subr.mxu0 0.0
    %911 = vmatpush1.msra.mxu0 0.0
    %912 = vmatprep.subr.mxu0 0.0
    %913 = vmatpush1.msra.mxu0 0.0
    %914 = vmatprep.subr.mxu0 0.0
    %915 = vmatpush1.msra.mxu0 %v879
    %916 = vmatprep.subr.mxu0 0.0
    %917 = vmatpush2.msra.mxu0 0.0
    %918 = vmatprep.subr.mxu0 0.0
    %919 = vmatpush2.msra.mxu0 0.0
    %920 = vmatprep.subr.mxu0 0.0
    %921 = vmatpush2.msra.mxu0 0.0
    %922 = vmatprep.subr.mxu0 0.0
    %923 = vmatpush2.msra.mxu0 0.0
    %924 = vmatprep.subr.mxu0 0.0
    %925 = vmatpush2.msra.mxu0 0.0
    %926 = vmatprep.subr.mxu0 0.0
    %927 = vmatpush2.msra.mxu0 0.0
    %928 = vmatprep.subr.mxu0 0.0
    %929 = vmatpush2.msra.mxu0 0.0
    %930 = vmatprep.subr.mxu0 0.0
    %931 = vmatpush2.msra.mxu0 0.0
    %932 = vmatprep.subr.mxu0 0.0
    %933 = vmatpush2.msra.mxu0 0.0
    %934 = vmatprep.subr.mxu0 0.0
    %935 = vmatpush2.msra.mxu0 0.0
    %936 = vmatprep.subr.mxu0 0.0
    %937 = vmatpush2.msra.mxu0 0.0
    %938 = vmatprep.subr.mxu0 0.0
    %939 = vmatpush2.msra.mxu0 0.0
    %940 = vmatprep.subr.mxu0 0.0
    %941 = vmatpush2.msra.mxu0 0.0
    %942 = vmatprep.subr.mxu0 0.0
    %943 = vmatpush2.msra.mxu0 0.0
    %944 = vmatprep.subr.mxu0 0.0
    %945 = vmatpush2.msra.mxu0 0.0
    %946 = vmatprep.subr.mxu0 0.0
    %947 = vmatpush2.msra.mxu0 0.0
    %948 = vmatprep.mubr.f32.mxu0 0.0
    %949 = vmatmul.mubr.f32.gmra.mxu0 %v882
    %v950 = vpop.f32.mrf.mxu0
    %v951 = vadd.f32 0.0, %v950
    %v952 = vpop.f32.mrf.mxu0
    %953 = vdwg.mxu0
    %v954 = vld [vmem:[#allocation2 + $0x90] sm:$0xff]
    %v955 = vld [vmem:[#allocation2 + $0x98] sm:$0xff]
    %v956 = vld [vmem:[#allocation2 + $0xa0] sm:$0xff]
    %v957 = vld [vmem:[#allocation2 + $0xa8] sm:$0xff]
    %v958 = vld [vmem:[#allocation2 + $0xb0] sm:$0xff]
    %v960 = vsel %vm112, %v951, 0
    %962 = vmatprep.subr.mxu0 0.0
    %963 = vmatpush1.msra.mxu0 0.0
    %964 = vmatprep.subr.mxu0 0.0
    %965 = vmatpush1.msra.mxu0 0.0
    %966 = vmatprep.subr.mxu0 0.0
    %967 = vmatpush1.msra.mxu0 0.0
    %968 = vmatprep.subr.mxu0 0.0
    %969 = vmatpush1.msra.mxu0 0.0
    %970 = vmatprep.subr.mxu0 0.0
    %971 = vmatpush1.msra.mxu0 0.0
    %972 = vmatprep.subr.mxu0 0.0
    %973 = vmatpush1.msra.mxu0 0.0
    %974 = vmatprep.subr.mxu0 0.0
    %975 = vmatpush1.msra.mxu0 0.0
    %976 = vmatprep.subr.mxu0 0.0
    %977 = vmatpush1.msra.mxu0 0.0
    %978 = vmatprep.subr.mxu0 0.0
    %979 = vmatpush1.msra.mxu0 0.0
    %980 = vmatprep.subr.mxu0 0.0
    %981 = vmatpush1.msra.mxu0 0.0
    %982 = vmatprep.subr.mxu0 0.0
    %983 = vmatpush1.msra.mxu0 0.0
    %984 = vmatprep.subr.mxu0 0.0
    %985 = vmatpush1.msra.mxu0 0.0
    %986 = vmatprep.subr.mxu0 0.0
    %987 = vmatpush1.msra.mxu0 %v957
    %988 = vmatprep.subr.mxu0 0.0
    %989 = vmatpush1.msra.mxu0 %v956
    %990 = vmatprep.subr.mxu0 0.0
    %991 = vmatpush1.msra.mxu0 %v955
    %992 = vmatprep.subr.mxu0 0.0
    %993 = vmatpush1.msra.mxu0 %v954
    %994 = vmatprep.subr.mxu0 0.0
    %995 = vmatpush2.msra.mxu0 0.0
    %996 = vmatprep.subr.mxu0 0.0
    %997 = vmatpush2.msra.mxu0 0.0
    %998 = vmatprep.subr.mxu0 0.0
    %999 = vmatpush2.msra.mxu0 0.0
    %1000 = vmatprep.subr.mxu0 0.0
    %1001 = vmatpush2.msra.mxu0 0.0
    %1002 = vmatprep.subr.mxu0 0.0
    %1003 = vmatpush2.msra.mxu0 0.0
    %1004 = vmatprep.subr.mxu0 0.0
    %1005 = vmatpush2.msra.mxu0 0.0
    %1006 = vmatprep.subr.mxu0 0.0
    %1007 = vmatpush2.msra.mxu0 0.0
    %1008 = vmatprep.subr.mxu0 0.0
    %1009 = vmatpush2.msra.mxu0 0.0
    %1010 = vmatprep.subr.mxu0 0.0
    %1011 = vmatpush2.msra.mxu0 0.0
    %1012 = vmatprep.subr.mxu0 0.0
    %1013 = vmatpush2.msra.mxu0 0.0
    %1014 = vmatprep.subr.mxu0 0.0
    %1015 = vmatpush2.msra.mxu0 0.0
    %1016 = vmatprep.subr.mxu0 0.0
    %1017 = vmatpush2.msra.mxu0 0.0
    %1018 = vmatprep.subr.mxu0 0.0
    %1019 = vmatpush2.msra.mxu0 0.0
    %1020 = vmatprep.subr.mxu0 0.0
    %1021 = vmatpush2.msra.mxu0 0.0
    %1022 = vmatprep.subr.mxu0 0.0
    %1023 = vmatpush2.msra.mxu0 0.0
    %1024 = vmatprep.subr.mxu0 0.0
    %1025 = vmatpush2.msra.mxu0 0.0
    %1026 = vmatprep.mubr.f32.mxu0 0.0
    %1027 = vmatmul.mubr.f32.gmra.mxu0 %v960
    %v1028 = vpop.f32.mrf.mxu0
    %v1029 = vadd.f32 %v958, %v1028
    %v1030 = vpop.f32.mrf.mxu0
    %1031 = vdwg.mxu0
    %1032 = vrot.lane.b32.xlu0 %v709, 64
    %v1033 = vpop.permute.xlu0 %1032
    %v1035 = vsel %vm112, %v1029, %v1033
    %v1037 = vsel %vm607, %v1035, 0
    %1039 = vmatprep.subr.mxu0 0.0
    %1040 = vmatpush1.msra.mxu0 0.0
    %1041 = vmatprep.subr.mxu0 0.0
    %1042 = vmatpush1.msra.mxu0 0.0
    %1043 = vmatprep.subr.mxu0 0.0
    %1044 = vmatpush1.msra.mxu0 0.0
    %1045 = vmatprep.subr.mxu0 0.0
    %1046 = vmatpush1.msra.mxu0 0.0
    %1047 = vmatprep.subr.mxu0 0.0
    %1048 = vmatpush1.msra.mxu0 0.0
    %1049 = vmatprep.subr.mxu0 0.0
    %1050 = vmatpush1.msra.mxu0 0.0
    %1051 = vmatprep.subr.mxu0 0.0
    %1052 = vmatpush1.msra.mxu0 0.0
    %1053 = vmatprep.subr.mxu0 0.0
    %1054 = vmatpush1.msra.mxu0 0.0
    %1055 = vmatprep.subr.mxu0 0.0
    %1056 = vmatpush1.msra.mxu0 %v198
    %1057 = vmatprep.subr.mxu0 0.0
    %1058 = vmatpush1.msra.mxu0 %v197
    %1059 = vmatprep.subr.mxu0 0.0
    %1060 = vmatpush1.msra.mxu0 %v196
    %1061 = vmatprep.subr.mxu0 0.0
    %1062 = vmatpush1.msra.mxu0 %v195
    %1063 = vmatprep.subr.mxu0 0.0
    %1064 = vmatpush1.msra.mxu0 %v194
    %1065 = vmatprep.subr.mxu0 0.0
    %1066 = vmatpush1.msra.mxu0 %v193
    %1067 = vmatprep.subr.mxu0 0.0
    %1068 = vmatpush1.msra.mxu0 %v192
    %1069 = vmatprep.subr.mxu0 0.0
    %1070 = vmatpush1.msra.mxu0 %v191
    %1071 = vmatprep.subr.mxu0 0.0
    %1072 = vmatpush2.msra.mxu0 0.0
    %1073 = vmatprep.subr.mxu0 0.0
    %1074 = vmatpush2.msra.mxu0 0.0
    %1075 = vmatprep.subr.mxu0 0.0
    %1076 = vmatpush2.msra.mxu0 0.0
    %1077 = vmatprep.subr.mxu0 0.0
    %1078 = vmatpush2.msra.mxu0 0.0
    %1079 = vmatprep.subr.mxu0 0.0
    %1080 = vmatpush2.msra.mxu0 0.0
    %1081 = vmatprep.subr.mxu0 0.0
    %1082 = vmatpush2.msra.mxu0 0.0
    %1083 = vmatprep.subr.mxu0 0.0
    %1084 = vmatpush2.msra.mxu0 0.0
    %1085 = vmatprep.subr.mxu0 0.0
    %1086 = vmatpush2.msra.mxu0 0.0
    %1087 = vmatprep.subr.mxu0 0.0
    %1088 = vmatpush2.msra.mxu0 0.0
    %1089 = vmatprep.subr.mxu0 0.0
    %1090 = vmatpush2.msra.mxu0 0.0
    %1091 = vmatprep.subr.mxu0 0.0
    %1092 = vmatpush2.msra.mxu0 0.0
    %1093 = vmatprep.subr.mxu0 0.0
    %1094 = vmatpush2.msra.mxu0 0.0
    %1095 = vmatprep.subr.mxu0 0.0
    %1096 = vmatpush2.msra.mxu0 0.0
    %1097 = vmatprep.subr.mxu0 0.0
    %1098 = vmatpush2.msra.mxu0 0.0
    %1099 = vmatprep.subr.mxu0 0.0
    %1100 = vmatpush2.msra.mxu0 0.0
    %1101 = vmatprep.subr.mxu0 0.0
    %1102 = vmatpush2.msra.mxu0 0.0
    %1103 = vmatprep.mubr.f32.mxu0 0.0
    %1104 = vmatmul.mubr.f32.gmra.mxu0 %v1037
    %v1105 = vpop.f32.mrf.mxu0
    %v1106 = vadd.f32 0.0, %v1105
    %v1107 = vpop.f32.mrf.mxu0
    %1108 = vdwg.mxu0
    %v1109 = vadd.f32 %v274, %v1106
    %v1110 = vxor.u32 %v1109, 2147483648
    %v1111 = vmul.f32 %v1110, 1.442695
    %v1112 = vpow.pop %v1111
    %v1113 = vadd.f32 %v1112, 1.0
    %v1114 = vrcp.pop %v1113
    %v1115 = vmul.f32 1.0, %v1114
    %v1116 = vtanh.pop %v1109
    %v1117 = vmul.f32 %v1115, %v703
    %1119 = vrot.lane.b32.xlu0 %v1116, 64
    %v1120 = vpop.permute.xlu0 %1119
    %v1122 = vmul.f32 %v1115, %v1120
    %1124 = vrot.lane.b32.xlu0 %v1122, 32
    %v1125 = vpop.permute.xlu0 %1124
    %v1127 = vadd.f32 %v1117, %v1125
    %v1128 = vtanh.pop %v1127
    %1130 = vrot.lane.b32.xlu0 %v1128, 64
    %v1131 = vpop.permute.xlu0 %1130
    %v1133 = vmul.f32 %v1115, %v1131
    %v1134 = vld [vmem:[#allocation2 + $0x120] sm:$0xff]
    %v1135 = vld [vmem:[#allocation2 + $0x128] sm:$0xff]
    %v1136 = vld [vmem:[#allocation2 + $0x130] sm:$0xff]
    %v1137 = vld [vmem:[#allocation2 + $0x138] sm:$0xff]
    %v1138 = vld [vmem:[#allocation2 + $0x140] sm:$0xff]
    %1140 = vrot.lane.b32.xlu0 %v1133, 32
    %v1141 = vpop.permute.xlu0 %1140
    %v1142 = vsel %vm112, %v1141, 0
    %1144 = vmatprep.subr.mxu0 0.0
    %1145 = vmatpush1.msra.mxu0 0.0
    %1146 = vmatprep.subr.mxu0 0.0
    %1147 = vmatpush1.msra.mxu0 0.0
    %1148 = vmatprep.subr.mxu0 0.0
    %1149 = vmatpush1.msra.mxu0 0.0
    %1150 = vmatprep.subr.mxu0 0.0
    %1151 = vmatpush1.msra.mxu0 0.0
    %1152 = vmatprep.subr.mxu0 0.0
    %1153 = vmatpush1.msra.mxu0 0.0
    %1154 = vmatprep.subr.mxu0 0.0
    %1155 = vmatpush1.msra.mxu0 0.0
    %1156 = vmatprep.subr.mxu0 0.0
    %1157 = vmatpush1.msra.mxu0 0.0
    %1158 = vmatprep.subr.mxu0 0.0
    %1159 = vmatpush1.msra.mxu0 0.0
    %1160 = vmatprep.subr.mxu0 0.0
    %1161 = vmatpush1.msra.mxu0 0.0
    %1162 = vmatprep.subr.mxu0 0.0
    %1163 = vmatpush1.msra.mxu0 0.0
    %1164 = vmatprep.subr.mxu0 0.0
    %1165 = vmatpush1.msra.mxu0 0.0
    %1166 = vmatprep.subr.mxu0 0.0
    %1167 = vmatpush1.msra.mxu0 0.0
    %1168 = vmatprep.subr.mxu0 0.0
    %1169 = vmatpush1.msra.mxu0 %v1137
    %1170 = vmatprep.subr.mxu0 0.0
    %1171 = vmatpush1.msra.mxu0 %v1136
    %1172 = vmatprep.subr.mxu0 0.0
    %1173 = vmatpush1.msra.mxu0 %v1135
    %1174 = vmatprep.subr.mxu0 0.0
    %1175 = vmatpush1.msra.mxu0 %v1134
    %1176 = vmatprep.subr.mxu0 0.0
    %1177 = vmatpush2.msra.mxu0 0.0
    %1178 = vmatprep.subr.mxu0 0.0
    %1179 = vmatpush2.msra.mxu0 0.0
    %1180 = vmatprep.subr.mxu0 0.0
    %1181 = vmatpush2.msra.mxu0 0.0
    %1182 = vmatprep.subr.mxu0 0.0
    %1183 = vmatpush2.msra.mxu0 0.0
    %1184 = vmatprep.subr.mxu0 0.0
    %1185 = vmatpush2.msra.mxu0 0.0
    %1186 = vmatprep.subr.mxu0 0.0
    %1187 = vmatpush2.msra.mxu0 0.0
    %1188 = vmatprep.subr.mxu0 0.0
    %1189 = vmatpush2.msra.mxu0 0.0
    %1190 = vmatprep.subr.mxu0 0.0
    %1191 = vmatpush2.msra.mxu0 0.0
    %1192 = vmatprep.subr.mxu0 0.0
    %1193 = vmatpush2.msra.mxu0 0.0
    %1194 = vmatprep.subr.mxu0 0.0
    %1195 = vmatpush2.msra.mxu0 0.0
    %1196 = vmatprep.subr.mxu0 0.0
    %1197 = vmatpush2.msra.mxu0 0.0
    %1198 = vmatprep.subr.mxu0 0.0
    %1199 = vmatpush2.msra.mxu0 0.0
    %1200 = vmatprep.subr.mxu0 0.0
    %1201 = vmatpush2.msra.mxu0 0.0
    %1202 = vmatprep.subr.mxu0 0.0
    %1203 = vmatpush2.msra.mxu0 0.0
    %1204 = vmatprep.subr.mxu0 0.0
    %1205 = vmatpush2.msra.mxu0 0.0
    %1206 = vmatprep.subr.mxu0 0.0
    %1207 = vmatpush2.msra.mxu0 0.0
    %1208 = vmatprep.mubr.f32.mxu0 0.0
    %1209 = vmatmul.mubr.f32.gmra.mxu0 %v1142
    %v1210 = vpop.f32.mrf.mxu0
    %v1211 = vadd.f32 %v1138, %v1210
    %v1212 = vpop.f32.mrf.mxu0
    %1213 = vdwg.mxu0
    %v1214 = vld [vmem:[#allocation2 + $0x148] sm:$0xff]
    %v1215 = vld [vmem:[#allocation2 + $0x150] sm:$0xff]
    %v1216 = vld [vmem:[#allocation2 + $0x158] sm:$0xff]
    %v1217 = vld [vmem:[#allocation2 + $0x160] sm:$0xff]
    %v1218 = vld [vmem:[#allocation2 + $0x168] sm:$0xff]
    %v1220 = vsel %vm112, %v1211, 0
    %1222 = vmatprep.subr.mxu0 0.0
    %1223 = vmatpush1.msra.mxu0 0.0
    %1224 = vmatprep.subr.mxu0 0.0
    %1225 = vmatpush1.msra.mxu0 0.0
    %1226 = vmatprep.subr.mxu0 0.0
    %1227 = vmatpush1.msra.mxu0 0.0
    %1228 = vmatprep.subr.mxu0 0.0
    %1229 = vmatpush1.msra.mxu0 0.0
    %1230 = vmatprep.subr.mxu0 0.0
    %1231 = vmatpush1.msra.mxu0 0.0
    %1232 = vmatprep.subr.mxu0 0.0
    %1233 = vmatpush1.msra.mxu0 0.0
    %1234 = vmatprep.subr.mxu0 0.0
    %1235 = vmatpush1.msra.mxu0 0.0
    %1236 = vmatprep.subr.mxu0 0.0
    %1237 = vmatpush1.msra.mxu0 0.0
    %1238 = vmatprep.subr.mxu0 0.0
    %1239 = vmatpush1.msra.mxu0 0.0
    %1240 = vmatprep.subr.mxu0 0.0
    %1241 = vmatpush1.msra.mxu0 0.0
    %1242 = vmatprep.subr.mxu0 0.0
    %1243 = vmatpush1.msra.mxu0 0.0
    %1244 = vmatprep.subr.mxu0 0.0
    %1245 = vmatpush1.msra.mxu0 0.0
    %1246 = vmatprep.subr.mxu0 0.0
    %1247 = vmatpush1.msra.mxu0 %v1217
    %1248 = vmatprep.subr.mxu0 0.0
    %1249 = vmatpush1.msra.mxu0 %v1216
    %1250 = vmatprep.subr.mxu0 0.0
    %1251 = vmatpush1.msra.mxu0 %v1215
    %1252 = vmatprep.subr.mxu0 0.0
    %1253 = vmatpush1.msra.mxu0 %v1214
    %1254 = vmatprep.subr.mxu0 0.0
    %1255 = vmatpush2.msra.mxu0 0.0
    %1256 = vmatprep.subr.mxu0 0.0
    %1257 = vmatpush2.msra.mxu0 0.0
    %1258 = vmatprep.subr.mxu0 0.0
    %1259 = vmatpush2.msra.mxu0 0.0
    %1260 = vmatprep.subr.mxu0 0.0
    %1261 = vmatpush2.msra.mxu0 0.0
    %1262 = vmatprep.subr.mxu0 0.0
    %1263 = vmatpush2.msra.mxu0 0.0
    %1264 = vmatprep.subr.mxu0 0.0
    %1265 = vmatpush2.msra.mxu0 0.0
    %1266 = vmatprep.subr.mxu0 0.0
    %1267 = vmatpush2.msra.mxu0 0.0
    %1268 = vmatprep.subr.mxu0 0.0
    %1269 = vmatpush2.msra.mxu0 0.0
    %1270 = vmatprep.subr.mxu0 0.0
    %1271 = vmatpush2.msra.mxu0 0.0
    %1272 = vmatprep.subr.mxu0 0.0
    %1273 = vmatpush2.msra.mxu0 0.0
    %1274 = vmatprep.subr.mxu0 0.0
    %1275 = vmatpush2.msra.mxu0 0.0
    %1276 = vmatprep.subr.mxu0 0.0
    %1277 = vmatpush2.msra.mxu0 0.0
    %1278 = vmatprep.subr.mxu0 0.0
    %1279 = vmatpush2.msra.mxu0 0.0
    %1280 = vmatprep.subr.mxu0 0.0
    %1281 = vmatpush2.msra.mxu0 0.0
    %1282 = vmatprep.subr.mxu0 0.0
    %1283 = vmatpush2.msra.mxu0 0.0
    %1284 = vmatprep.subr.mxu0 0.0
    %1285 = vmatpush2.msra.mxu0 0.0
    %1286 = vmatprep.mubr.f32.mxu0 0.0
    %1287 = vmatmul.mubr.f32.gmra.mxu0 %v1220
    %v1288 = vpop.f32.mrf.mxu0
    %v1289 = vadd.f32 %v1218, %v1288
    %v1290 = vpop.f32.mrf.mxu0
    %1291 = vdwg.mxu0
    %vm1292 = vcmp.gt.f32.partialorder %v1289, 0.0
    %v1293 = vmul.f32 %v1289, 0.01
    %v1294 = vsel %vm1292, %v1289, %v1293
    %v1295 = vld [vmem:[#allocation2 + $0x170] sm:$0xff]
    %v1296 = vld [vmem:[#allocation2 + $0x178] sm:$0xff]
    %v1297 = vld [vmem:[#allocation2 + $0x180] sm:$0xff]
    %v1298 = vld [vmem:[#allocation2 + $0x188] sm:$0xff]
    %v1299 = vld [vmem:[#allocation2 + $0x190] sm:$0xff]
    %1300 = vrot.lane.b32.xlu0 %v1211, 96
    %v1301 = vpop.permute.xlu0 %1300
    %v1302 = vsel %vm112, %v1301, 0
    %1304 = vmatprep.subr.mxu0 0.0
    %1305 = vmatpush1.msra.mxu0 0.0
    %1306 = vmatprep.subr.mxu0 0.0
    %1307 = vmatpush1.msra.mxu0 0.0
    %1308 = vmatprep.subr.mxu0 0.0
    %1309 = vmatpush1.msra.mxu0 0.0
    %1310 = vmatprep.subr.mxu0 0.0
    %1311 = vmatpush1.msra.mxu0 0.0
    %1312 = vmatprep.subr.mxu0 0.0
    %1313 = vmatpush1.msra.mxu0 0.0
    %1314 = vmatprep.subr.mxu0 0.0
    %1315 = vmatpush1.msra.mxu0 0.0
    %1316 = vmatprep.subr.mxu0 0.0
    %1317 = vmatpush1.msra.mxu0 0.0
    %1318 = vmatprep.subr.mxu0 0.0
    %1319 = vmatpush1.msra.mxu0 0.0
    %1320 = vmatprep.subr.mxu0 0.0
    %1321 = vmatpush1.msra.mxu0 0.0
    %1322 = vmatprep.subr.mxu0 0.0
    %1323 = vmatpush1.msra.mxu0 0.0
    %1324 = vmatprep.subr.mxu0 0.0
    %1325 = vmatpush1.msra.mxu0 0.0
    %1326 = vmatprep.subr.mxu0 0.0
    %1327 = vmatpush1.msra.mxu0 0.0
    %1328 = vmatprep.subr.mxu0 0.0
    %1329 = vmatpush1.msra.mxu0 %v1298
    %1330 = vmatprep.subr.mxu0 0.0
    %1331 = vmatpush1.msra.mxu0 %v1297
    %1332 = vmatprep.subr.mxu0 0.0
    %1333 = vmatpush1.msra.mxu0 %v1296
    %1334 = vmatprep.subr.mxu0 0.0
    %1335 = vmatpush1.msra.mxu0 %v1295
    %1336 = vmatprep.subr.mxu0 0.0
    %1337 = vmatpush2.msra.mxu0 0.0
    %1338 = vmatprep.subr.mxu0 0.0
    %1339 = vmatpush2.msra.mxu0 0.0
    %1340 = vmatprep.subr.mxu0 0.0
    %1341 = vmatpush2.msra.mxu0 0.0
    %1342 = vmatprep.subr.mxu0 0.0
    %1343 = vmatpush2.msra.mxu0 0.0
    %1344 = vmatprep.subr.mxu0 0.0
    %1345 = vmatpush2.msra.mxu0 0.0
    %1346 = vmatprep.subr.mxu0 0.0
    %1347 = vmatpush2.msra.mxu0 0.0
    %1348 = vmatprep.subr.mxu0 0.0
    %1349 = vmatpush2.msra.mxu0 0.0
    %1350 = vmatprep.subr.mxu0 0.0
    %1351 = vmatpush2.msra.mxu0 0.0
    %1352 = vmatprep.subr.mxu0 0.0
    %1353 = vmatpush2.msra.mxu0 0.0
    %1354 = vmatprep.subr.mxu0 0.0
    %1355 = vmatpush2.msra.mxu0 0.0
    %1356 = vmatprep.subr.mxu0 0.0
    %1357 = vmatpush2.msra.mxu0 0.0
    %1358 = vmatprep.subr.mxu0 0.0
    %1359 = vmatpush2.msra.mxu0 0.0
    %1360 = vmatprep.subr.mxu0 0.0
    %1361 = vmatpush2.msra.mxu0 0.0
    %1362 = vmatprep.subr.mxu0 0.0
    %1363 = vmatpush2.msra.mxu0 0.0
    %1364 = vmatprep.subr.mxu0 0.0
    %1365 = vmatpush2.msra.mxu0 0.0
    %1366 = vmatprep.subr.mxu0 0.0
    %1367 = vmatpush2.msra.mxu0 0.0
    %1368 = vmatprep.mubr.f32.mxu0 0.0
    %1369 = vmatmul.mubr.f32.gmra.mxu0 %v1302
    %v1370 = vpop.f32.mrf.mxu0
    %v1371 = vadd.f32 %v1299, %v1370
    %v1372 = vpop.f32.mrf.mxu0
    %1373 = vdwg.mxu0
    %vm1374 = vcmp.gt.f32.partialorder %v1371, 0.0
    %v1375 = vmul.f32 %v1371, 0.01
    %v1376 = vsel %vm1374, %v1371, %v1375
    %v1377 = vld [vmem:[#allocation2 + $0x198] sm:$0xff]
    %v1378 = vld [vmem:[#allocation2 + $0x1a0] sm:$0xff]
    %v1379 = vld [vmem:[#allocation2 + $0x1a8] sm:$0xff]
    %v1380 = vld [vmem:[#allocation2 + $0x1b0] sm:$0xff]
    %v1381 = vld [vmem:[#allocation2 + $0x1b8] sm:$0xff]
    %1382 = vmatprep.subr.mxu0 0.0
    %1383 = vmatpush1.msra.mxu0 0.0
    %1384 = vmatprep.subr.mxu0 0.0
    %1385 = vmatpush1.msra.mxu0 0.0
    %1386 = vmatprep.subr.mxu0 0.0
    %1387 = vmatpush1.msra.mxu0 0.0
    %1388 = vmatprep.subr.mxu0 0.0
    %1389 = vmatpush1.msra.mxu0 0.0
    %1390 = vmatprep.subr.mxu0 0.0
    %1391 = vmatpush1.msra.mxu0 0.0
    %1392 = vmatprep.subr.mxu0 0.0
    %1393 = vmatpush1.msra.mxu0 0.0
    %1394 = vmatprep.subr.mxu0 0.0
    %1395 = vmatpush1.msra.mxu0 0.0
    %1396 = vmatprep.subr.mxu0 0.0
    %1397 = vmatpush1.msra.mxu0 0.0
    %1398 = vmatprep.subr.mxu0 0.0
    %1399 = vmatpush1.msra.mxu0 0.0
    %1400 = vmatprep.subr.mxu0 0.0
    %1401 = vmatpush1.msra.mxu0 0.0
    %1402 = vmatprep.subr.mxu0 0.0
    %1403 = vmatpush1.msra.mxu0 0.0
    %1404 = vmatprep.subr.mxu0 0.0
    %1405 = vmatpush1.msra.mxu0 0.0
    %1406 = vmatprep.subr.mxu0 0.0
    %1407 = vmatpush1.msra.mxu0 %v1380
    %1408 = vmatprep.subr.mxu0 0.0
    %1409 = vmatpush1.msra.mxu0 %v1379
    %1410 = vmatprep.subr.mxu0 0.0
    %1411 = vmatpush1.msra.mxu0 %v1378
    %1412 = vmatprep.subr.mxu0 0.0
    %1413 = vmatpush1.msra.mxu0 %v1377
    %1414 = vmatprep.subr.mxu0 0.0
    %1415 = vmatpush2.msra.mxu0 0.0
    %1416 = vmatprep.subr.mxu0 0.0
    %1417 = vmatpush2.msra.mxu0 0.0
    %1418 = vmatprep.subr.mxu0 0.0
    %1419 = vmatpush2.msra.mxu0 0.0
    %1420 = vmatprep.subr.mxu0 0.0
    %1421 = vmatpush2.msra.mxu0 0.0
    %1422 = vmatprep.subr.mxu0 0.0
    %1423 = vmatpush2.msra.mxu0 0.0
    %1424 = vmatprep.subr.mxu0 0.0
    %1425 = vmatpush2.msra.mxu0 0.0
    %1426 = vmatprep.subr.mxu0 0.0
    %1427 = vmatpush2.msra.mxu0 0.0
    %1428 = vmatprep.subr.mxu0 0.0
    %1429 = vmatpush2.msra.mxu0 0.0
    %1430 = vmatprep.subr.mxu0 0.0
    %1431 = vmatpush2.msra.mxu0 0.0
    %1432 = vmatprep.subr.mxu0 0.0
    %1433 = vmatpush2.msra.mxu0 0.0
    %1434 = vmatprep.subr.mxu0 0.0
    %1435 = vmatpush2.msra.mxu0 0.0
    %1436 = vmatprep.subr.mxu0 0.0
    %1437 = vmatpush2.msra.mxu0 0.0
    %1438 = vmatprep.subr.mxu0 0.0
    %1439 = vmatpush2.msra.mxu0 0.0
    %1440 = vmatprep.subr.mxu0 0.0
    %1441 = vmatpush2.msra.mxu0 0.0
    %1442 = vmatprep.subr.mxu0 0.0
    %1443 = vmatpush2.msra.mxu0 0.0
    %1444 = vmatprep.subr.mxu0 0.0
    %1445 = vmatpush2.msra.mxu0 0.0
    %1446 = vmatprep.mubr.f32.mxu0 0.0
    %1447 = vmatmul.mubr.f32.gmra.mxu0 %v1142
    %v1448 = vpop.f32.mrf.mxu0
    %v1449 = vadd.f32 %v1381, %v1448
    %v1450 = vpop.f32.mrf.mxu0
    %1451 = vdwg.mxu0
    %vm1452 = vcmask 113736
    %v1453 = vsel %vm1452, %v1449, -inf
    %1454 = vmax.xlane.f32.xlu0 %v1453
    %v1455 = vpop.xlane.xlu0 %1454
    %v1456 = vsub.f32 %v1449, %v1455
    %v1457 = vmul.f32 %v1456, 1.442695
    %v1458 = vpow.pop %v1457
    %1460 = vrot.lane.b32.xlu0 %v1458, 119
    %v1461 = vpop.permute.xlu0 %1460
    %vm1463 = vcmask 39936
    %v1464 = vsel %vm1463, %v1461, 0.0
    %1465 = vadd.xlane.f32.xlu0 %v1464
    %v1466 = vpop.xlane.xlu0 %1465
    %v1467 = vlog2.pop %v1466
    %v1468 = vmul.f32 %v1467, 0.6931472
    %v1469 = vadd.f32 %v1468, %v1455
    %v1470 = vsub.f32 %v1449, %v1469
    %1471 = vst [vmem:[%s2] sm:$0xff] 0.0
    %1472 = vst [vmem:[%s2 + $0x8] sm:$0xff] 0.0
    %1473 = vst [vmem:[%s2 + $0x10] sm:$0xff] 0.0
    %1474 = vst [vmem:[%s2 + $0x18] sm:$0xff] 0.0
    %v1476 = vsel %vm112, %v1141, %v1127
    %1477 = vst.msk [vmem:[%s2] sm:$0xff] %vm607, %v1476
    %vm1478 = vcmask 293888
    %1479 = vst.msk [vmem:[%s2 + $0x8] sm:$0xff] %vm1478, %v1294
    %vm1480 = vcmask 662528
    %1481 = vst.msk [vmem:[%s2 + $0x10] sm:$0xff] %vm1480, %v1376
    %vm1482 = vcmask 72704
    %v1483 = vsel %vm1482, %v1449, %v1470
    %vm1484 = vcmask 113664
    %1485 = vst.msk [vmem:[%s2 + $0x18] sm:$0xff] %vm1484, %v1483
    // Predicated region
    $region14: #{commnet_forward.1} parent=1 // pred_check
      _
    $region15: #{commnet_forward.1} parent=1 // pred_check_branch
      %1487 = sbr.rel (0) target = $region17
    $region16: #{commnet_forward.1} parent=1 // pred_region
      _
    $region17: #{commnet_forward.1} parent=1 // pred_fallthru
      _
    // Predicated region
    $region18: #{commnet_forward.1} parent=1 // pred_check
      _
    $region19: #{commnet_forward.1} parent=1 // pred_check_branch
      %1489 = sbr.rel (0) target = $region21
    $region20: #{commnet_forward.1} parent=1 // pred_region
      _
    $region21: #{commnet_forward.1} parent=1 // pred_fallthru
      _
    %1490 = vsyncpa [#allocation3], 1

</llo_original>
